<compile_context>
chip_gen: v7x
topology: tpu7x:2x2x1
jax: 0.10.0
libtpu: 0.0.40
codegen_flags: <defaults>
</compile_context>

<pallas_src>
import math

import jax
import jax.numpy as jnp
from jax.experimental import pallas as pl
from jax.experimental.pallas import tpu as pltpu

D_MODEL = 512
ONEHOT_H = 32
MAX_TILE_L = 512            # rows per grid step for large sequence lengths


def _seq_embed_kernel(ids_ref, table_ref, pe_ref, o_ref):
    # ids_ref  : (1, TILE_L, 1)        int32 token ids for this (batch, L-tile)
    # table_ref: (ONEHOT_H, D_MODEL)   f32   GELU(W^T + b) per vocab row (VMEM-resident)
    # pe_ref   : (TILE_L, D_MODEL)     f32   positional-encoding rows for this L-tile
    # o_ref    : (1, TILE_L, D_MODEL)
    ids = ids_ref[0]                                            # (TILE_L, 1)
    tile_l = ids.shape[0]
    lanes = jax.lax.broadcasted_iota(jnp.int32, (tile_l, ONEHOT_H), 1)
    onehot = (ids == lanes).astype(jnp.float32)                 # (TILE_L, ONEHOT_H)
    # One-hot selection matmul == exact row gather of the precomputed GELU table.
    y = jnp.dot(onehot, table_ref[...],
                preferred_element_type=jnp.float32,
                precision=jax.lax.Precision.HIGHEST)            # (TILE_L, D_MODEL)
    o_ref[0] = (y + pe_ref[...]).astype(o_ref.dtype)


def seq_embedding_forward(token_ids, gelu_table, pe, *, out_dtype=jnp.float32):
    """token_ids: (B, L) int32; gelu_table: (ONEHOT_H, D_MODEL) f32 = GELU(W^T + b);
    pe: (>=L, D_MODEL) f32.  Returns (B, L, D_MODEL) in out_dtype (f32 default;
    bf16 halves output writeback bytes if downstream accepts it)."""
    B, L = token_ids.shape
    assert gelu_table.shape == (ONEHOT_H, D_MODEL)

    tile_l = L if L <= MAX_TILE_L else MAX_TILE_L
    n_lt = pl.cdiv(L, tile_l)
    Lp = n_lt * tile_l

    ids = token_ids.astype(jnp.int32)
    pe_slab = pe[:L]
    if Lp != L:                                   # pad L to a tile multiple
        ids = jnp.pad(ids, ((0, 0), (0, Lp - L)))
        pe_slab = jnp.pad(pe_slab, ((0, Lp - L), (0, 0)))
    ids3 = ids.reshape(B, Lp, 1)                  # feature dim last (lane dim = 1)

    out_itemsize = jnp.dtype(out_dtype).itemsize
    cost = pl.CostEstimate(
        flops=2 * B * Lp * ONEHOT_H * D_MODEL,
        transcendentals=0,
        bytes_accessed=(ids3.size * 4 + gelu_table.size * 4 + pe_slab.size * 4
                        + B * Lp * D_MODEL * out_itemsize),
    )

    out = pl.pallas_call(
        _seq_embed_kernel,
        out_shape=jax.ShapeDtypeStruct((B, Lp, D_MODEL), out_dtype),
        grid_spec=pltpu.PrefetchScalarGridSpec(
            num_scalar_prefetch=0,
            # B innermost so the pe block index is unchanged across batch steps.
            grid=(n_lt, B),
            in_specs=[
                pl.BlockSpec((1, tile_l, 1), lambda lt, b: (b, lt, 0)),
                pl.BlockSpec((ONEHOT_H, D_MODEL), lambda lt, b: (0, 0)),
                pl.BlockSpec((tile_l, D_MODEL), lambda lt, b: (lt, 0)),
            ],
            out_specs=pl.BlockSpec((1, tile_l, D_MODEL), lambda lt, b: (b, lt, 0)),
        ),
        compiler_params=pltpu.CompilerParams(
            dimension_semantics=("parallel", "parallel"),
            vmem_limit_bytes=32 * 1024 * 1024,
        ),
        cost_estimate=cost,
    )(ids3, gelu_table, pe_slab)

    if Lp != L:
        out = out[:, :L]
    return out


def make_positional_encoding(max_len, d_model):
    """Same construction as PositionalEncoding.__init__ (sin on even, cos on odd)."""
    position = jnp.arange(max_len, dtype=jnp.float32)[:, None]          # (L, 1)
    div_term = jnp.exp(jnp.arange(0, d_model, 2, dtype=jnp.float32)
                       * (-math.log(10000.0) / d_model))                # (d_model/2,)
    pe = jnp.zeros((max_len, d_model), dtype=jnp.float32)
    pe = pe.at[:, 0::2].set(jnp.sin(position * div_term))
    pe = pe.at[:, 1::2].set(jnp.cos(position * div_term))
    return pe


def exact_gelu(x):
    # PyTorch nn.GELU default: 0.5 * x * (1 + erf(x / sqrt(2)))
    return 0.5 * x * (1.0 + jax.lax.erf(x * (1.0 / math.sqrt(2.0))))


class SEQembeddingPallas:
    """JAX/Pallas port of SEQembedding (inference semantics, dropout=identity)."""

    def __init__(self, max_length, key):
        self.max_length = max_length
        k_w, k_b = jax.random.split(key)
        # nn.Linear(ONEHOT_H, D_MODEL): weight (D_MODEL, ONEHOT_H), bias (D_MODEL,)
        bound = 1.0 / math.sqrt(ONEHOT_H)
        w = jax.random.uniform(k_w, (D_MODEL, ONEHOT_H), jnp.float32, -bound, bound)
        self.weight_t = jnp.transpose(w)                        # (ONEHOT_H, D_MODEL)
        self.bias = jax.random.uniform(k_b, (D_MODEL,), jnp.float32, -bound, bound)
        # One-hot input => Linear+GELU of token v is row v of GELU(W^T + b).
        # Precompute once (64 KiB, lives in VMEM during the kernel).
        self.gelu_table = exact_gelu(self.weight_t + self.bias[None, :])  # (32, 512)
        self.pe = make_positional_encoding(5000, D_MODEL)
        # one-hot token-embedding table (stands in for ./one-hot.csv): vocab x 32
        self.vocab = 24
        self.tok_table = jnp.eye(self.vocab, ONEHOT_H, dtype=jnp.float32)

    def __call__(self, token_ids):
        # token_ids: (B, max_length) int32 — stands in for tokenizer output
        out = seq_embedding_forward(token_ids, self.gelu_table, self.pe)
        return out, token_ids


if __name__ == "__main__":
    key = jax.random.PRNGKey(0)
    k_model, k_tok = jax.random.split(key)

    B, L = 2, 16
    model = SEQembeddingPallas(max_length=L, key=k_model)
    token_ids = jax.random.randint(k_tok, (B, L), 0, model.vocab, dtype=jnp.int32)

    out, ids = model(token_ids)
    out = jax.block_until_ready(out)

    # pure-JAX reference matching the PyTorch module:
    # one-hot lookup -> Linear -> GELU -> + positional encoding
    # (one-hot @ W^T is exactly a row gather of W^T, so use the gather form)
    ref = jnp.take(model.weight_t, token_ids, axis=0) + model.bias      # (B, L, 512)
    ref = exact_gelu(ref)
    ref = ref + model.pe[:L][None, :, :]

    assert out.shape == (B, L, D_MODEL)
    assert jnp.allclose(out, ref, atol=1e-4, rtol=1e-4)

    print("KERNEL_OK")
</pallas_src>

<mosaic_0001>
module attributes {stable_mosaic.version = 11 : i64} {
  func.func @_seq_embed_kernel(%arg0: i32, %arg1: i32, %arg2: memref<1x16x1xi32, #tpu.memory_space<vmem>>, %arg3: memref<32x512xf32, #tpu.memory_space<vmem>>, %arg4: memref<16x512xf32, #tpu.memory_space<vmem>>, %arg5: memref<1x16x512xf32, #tpu.memory_space<vmem>>) attributes {dimension_semantics = [#tpu.dimension_semantics<parallel>, #tpu.dimension_semantics<parallel>], iteration_bounds = array<i64: 1, 2>, scalar_prefetch = 0 : i64, scratch_operands = 0 : i64, tpu.core_type = #tpu.core_type<tc>, window_params = [{transform_indices = @transform_0, window_bounds = array<i64: 1, 16, 1>}, {pipeline_mode = #tpu.pipeline_mode<synchronous>, transform_indices = @transform_1, window_bounds = array<i64: 32, 512>}, {transform_indices = @transform_2, window_bounds = array<i64: 16, 512>}, {transform_indices = @transform_3, window_bounds = array<i64: 1, 16, 512>}]} {
    %c0 = arith.constant 0 : index
    %c0_0 = arith.constant 0 : index
    %c0_1 = arith.constant 0 : index
    %0 = vector.load %arg2[%c0, %c0_0, %c0_1] : memref<1x16x1xi32, #tpu.memory_space<vmem>>, vector<1x16x1xi32>
    %1 = vector.shape_cast %0 : vector<1x16x1xi32> to vector<16x1xi32>
    %2 = tpu.iota {dimensions = array<i32: 1>} : vector<16x32xi32>
    %3 = vector.broadcast %1 : vector<16x1xi32> to vector<16x32xi32>
    %4 = arith.cmpi eq, %3, %2 : vector<16x32xi32>
    %5 = arith.extui %4 : vector<16x32xi1> to vector<16x32xi32>
    %6 = arith.sitofp %5 : vector<16x32xi32> to vector<16x32xf32>
    %c0_2 = arith.constant 0 : index
    %c0_3 = arith.constant 0 : index
    %7 = vector.load %arg3[%c0_2, %c0_3] : memref<32x512xf32, #tpu.memory_space<vmem>>, vector<32x512xf32>
    %cst = arith.constant dense<0.000000e+00> : vector<16x512xf32>
    %8 = tpu.matmul %6, %7, %cst {dimension_numbers = #tpu.dot_dimension_numbers<[1], [0], [0], [1], [0, 0, 1, 1], [], []>, precision = #tpu.contract_precision<fp32>} : vector<16x32xf32>, vector<32x512xf32>, vector<16x512xf32> -> vector<16x512xf32>
    %c0_4 = arith.constant 0 : index
    %c0_5 = arith.constant 0 : index
    %9 = vector.load %arg4[%c0_4, %c0_5] : memref<16x512xf32, #tpu.memory_space<vmem>>, vector<16x512xf32>
    %10 = arith.addf %8, %9 : vector<16x512xf32>
    %c0_6 = arith.constant 0 : index
    %c0_7 = arith.constant 0 : index
    %c0_8 = arith.constant 0 : index
    %11 = vector.load %arg5[%c0_6, %c0_7, %c0_8] : memref<1x16x512xf32, #tpu.memory_space<vmem>>, vector<1x16x512xf32>
    %12 = vector.shape_cast %11 : vector<1x16x512xf32> to vector<16x512xf32>
    %13 = vector.shape_cast %10 : vector<16x512xf32> to vector<1x16x512xf32>
    tpu.vector_store %arg5[%c0_6, %c0_7, %c0_8], %13 {strides = array<i32>} : memref<1x16x512xf32, #tpu.memory_space<vmem>>, vector<1x16x512xf32>,
    return
  }
  func.func @transform_0(%arg0: i32, %arg1: i32) -> (i32, i32, i32) {
    %c0_i32 = arith.constant 0 : i32
    %c0_i32_0 = arith.constant 0 : i32
    return %arg1, %arg0, %c0_i32 : i32, i32, i32
  }
  func.func @transform_1(%arg0: i32, %arg1: i32) -> (i32, i32) {
    %c0_i32 = arith.constant 0 : i32
    %c0_i32_0 = arith.constant 0 : i32
    %c0_i32_1 = arith.constant 0 : i32
    return %c0_i32, %c0_i32_0 : i32, i32
  }
  func.func @transform_2(%arg0: i32, %arg1: i32) -> (i32, i32) {
    %c0_i32 = arith.constant 0 : i32
    %c0_i32_0 = arith.constant 0 : i32
    return %arg0, %c0_i32 : i32, i32
  }
  func.func @transform_3(%arg0: i32, %arg1: i32) -> (i32, i32, i32) {
    %c0_i32 = arith.constant 0 : i32
    %c0_i32_0 = arith.constant 0 : i32
    return %arg1, %arg0, %c0_i32 : i32, i32, i32
  }
}

</mosaic_0001>

<llo_original>
// kernel: tpu_custom_call.1
$region0: #{tpu_custom_call.1}
  #allocation0 [shape = 'u32[]', space=smem, size = 0x4, offset = 0x4, fixed_abs, tag = 'smem constant byte address 0x4 - core index']
  #allocation1 [shape = 'u32[144,128]{1,0:T(1,128)}', space=vmem, size = 0x12000, scoped, tag = 'internal scratch']
  %s0 = inlined_call_operand.vmem [shape: s32[2,16,1], index: 0, kind: input, shape index: {}]
  %s1 = inlined_call_operand.hbm [shape: f32[32,512], index: 1, kind: input, shape index: {}]
  %s2 = inlined_call_operand.hbm [shape: f32[16,512], index: 2, kind: input, shape index: {}]
  %s3 = inlined_call_operand.hbm [shape: f32[2,16,512], index: 3, kind: output, shape index: {}]
  %s4 = sld [smem:[#allocation0]]
  $region53: #{tpu_custom_call.1} parent=0
    _
  %s6 = ssub.s32 1, %s4
  %s7 = scalar_select 0, %s6, %s4
  $region1: #{tpu_custom_call.1} parent=0
    #allocation2 [shape = 'u8[65536]{0}', space=vmem, size = 0x10000, scoped, tag = 'input window, operand 1, single buffered']
    #allocation3 [shape = 's32[2]{0}', space=sflag, size = 0x8, scoped, tag = 'scoped memory for tpu_custom_call.1']
    #allocation4 [shape = 's32[2]{0}', space=sflag, size = 0x8, scoped, tag = 'scoped memory for tpu_custom_call.1']
    #allocation5 [shape = 'u8[32768]{0}', space=vmem, size = 0x8000, scoped, tag = 'input window, operand 2, single buffered']
    #allocation6 [shape = 's32[1]{0}', space=sflag, size = 0x4, scoped, tag = 'scoped memory for tpu_custom_call.1']
    #allocation7 [shape = 'u8[65536]{0}', space=vmem, size = 0x10000, scoped, tag = 'output window, operand 0']
    %8 = vsyncpa [#allocation3], 0
    %9 = vsyncpa [#allocation6], 0
    %10 = vsyncpa [#allocation4], 0
    %s11 = scalar_lea.sflag [#allocation4], 1
    %12 = vsyncpa %s11, 0
    loop: start=0, step=1, limit=4
    $region2: #{tpu_custom_call.1} parent=1 // loop_pre_header
      _
    $region3: #{tpu_custom_call.1} parent=1 // loop_header
      %s14 = sphi 0, %s18
      %p15 = scmp.ge.s32.totalorder %s14, 4
      %s21 = sphi 0, %s33
      %s22 = sphi 0, %s29
      %s23 = sphi 0, %s21
      %s24 = sphi 0, %s22
      %s25 = sphi 0, %s23
      %s26 = sphi 0, %s24
      %s38 = sphi 0, %s40
      %s41 = sphi 0, %s38
      %s42 = sphi 0, %s41
      %s58 = sphi 0, %s42
      %s62 = sphi 0, %s62
      %s64 = sphi 0, %s62
      %s65 = sphi 0, %s64
      %s79 = sphi 0, %s65
      %s85 = sphi 0, %s87
      %s88 = sphi 0, %s85
      %s89 = sphi 0, %s88
      %s105 = sphi 0, %s89
      %s113 = sphi 0, %s115
      %s116 = sphi 0, %s113
      %s117 = sphi 0, %s116
      %s133 = sphi 0, %s117
    $region4: #{tpu_custom_call.1} parent=1 // loop_header_branch
      %17 = sbr.rel (%p15) target = $region8
    $region5: #{tpu_custom_call.1} parent=1 // loop_body
      %s19 = ssub.s32 %s14, 1
      %s20 = ssub.s32 %s14, 2
      %s27 = sadd.s32 1, %s22
      %p28 = scmp.ge.s32.totalorder %s27, 2
      %s29 = scalar_select %p28, 0, %s27
      %s30 = sadd.s32 1, %s21
      %s31 = scalar_select %p28, %s30, %s21
      %p32 = scmp.ge.s32.totalorder %s31, 1
      %s33 = scalar_select %p32, 0, %s31
      %s34 = ssub.s32 %s22, %s29
      %s35 = ssub.s32 %s21, %s33
      %s36 = sor.u32 %s34, %s35
      %p37 = scmp.eq.s32.totalorder %s36, 0
      %s39 = sadd.s32 %s38, 1
      %s40 = scalar_select %p37, %s38, %s39
      %p43 = pneg %p37
      %p44 = scmp.eq.s32.totalorder %s14, 1
      %p45 = por %p43, %p44
      %p46 = scmp.ne.s32.totalorder %s38, %s41
      %p47 = scmp.eq.s32.totalorder %s14, 0
      %p48 = por %p46, %p47
      %p49 = scmp.ne.s32.totalorder %s38, %s41
      %p50 = scmp.eq.s32.totalorder %s19, 1
      %p51 = por %p49, %p50
      %p52 = scmp.ne.s32.totalorder %s41, %s42
      %p53 = scmp.eq.s32.totalorder %s19, 0
      %p54 = por %p52, %p53
      %p55 = scmp.ne.s32.totalorder %s41, %s42
      %p56 = scmp.eq.s32.totalorder %s20, 1
      %p57 = por %p55, %p56
      %p59 = scmp.ne.s32.totalorder %s42, %s58
      %p60 = scmp.eq.s32.totalorder %s20, 0
      %p61 = por %p59, %p60
      %s63 = sadd.s32 %s62, 1
      %p66 = scmp.eq.s32.totalorder %s14, 1
      %p67 = scmp.ne.s32.totalorder %s62, %s64
      %p68 = scmp.eq.s32.totalorder %s14, 0
      %p69 = por %p67, %p68
      %p70 = scmp.ne.s32.totalorder %s62, %s64
      %p71 = scmp.eq.s32.totalorder %s19, 1
      %p72 = por %p70, %p71
      %p73 = scmp.ne.s32.totalorder %s64, %s65
      %p74 = scmp.eq.s32.totalorder %s19, 0
      %p75 = por %p73, %p74
      %p76 = scmp.ne.s32.totalorder %s64, %s65
      %p77 = scmp.eq.s32.totalorder %s20, 1
      %p78 = por %p76, %p77
      %p80 = scmp.ne.s32.totalorder %s65, %s79
      %p81 = scmp.eq.s32.totalorder %s20, 0
      %p82 = por %p80, %p81
      %s83 = ssub.s32 %s21, %s33
      %p84 = scmp.eq.s32.totalorder %s83, 0
      %s86 = sadd.s32 %s85, 1
      %s87 = scalar_select %p84, %s85, %s86
      %p90 = pneg %p84
      %p91 = scmp.eq.s32.totalorder %s14, 1
      %p92 = por %p90, %p91
      %p93 = scmp.ne.s32.totalorder %s85, %s88
      %p94 = scmp.eq.s32.totalorder %s14, 0
      %p95 = por %p93, %p94
      %p96 = scmp.ne.s32.totalorder %s85, %s88
      %p97 = scmp.eq.s32.totalorder %s19, 1
      %p98 = por %p96, %p97
      %p99 = scmp.ne.s32.totalorder %s88, %s89
      %p100 = scmp.eq.s32.totalorder %s19, 0
      %p101 = por %p99, %p100
      %p102 = scmp.ne.s32.totalorder %s88, %s89
      %p103 = scmp.eq.s32.totalorder %s20, 1
      %p104 = por %p102, %p103
      %p106 = scmp.ne.s32.totalorder %s89, %s105
      %p107 = scmp.eq.s32.totalorder %s20, 0
      %p108 = por %p106, %p107
      %s109 = ssub.s32 %s22, %s29
      %s110 = ssub.s32 %s21, %s33
      %s111 = sor.u32 %s109, %s110
      %p112 = scmp.eq.s32.totalorder %s111, 0
      %s114 = sadd.s32 %s113, 1
      %s115 = scalar_select %p112, %s113, %s114
      %p118 = pneg %p112
      %p119 = scmp.eq.s32.totalorder %s14, 1
      %p120 = por %p118, %p119
      %p121 = scmp.ne.s32.totalorder %s113, %s116
      %p122 = scmp.eq.s32.totalorder %s14, 0
      %p123 = por %p121, %p122
      %p124 = scmp.ne.s32.totalorder %s113, %s116
      %p125 = scmp.eq.s32.totalorder %s19, 1
      %p126 = por %p124, %p125
      %p127 = scmp.ne.s32.totalorder %s116, %s117
      %p128 = scmp.eq.s32.totalorder %s19, 0
      %p129 = por %p127, %p128
      %p130 = scmp.ne.s32.totalorder %s116, %s117
      %p131 = scmp.eq.s32.totalorder %s20, 1
      %p132 = por %p130, %p131
      %p134 = scmp.ne.s32.totalorder %s117, %s133
      %p135 = scmp.eq.s32.totalorder %s20, 0
      %p136 = por %p134, %p135
      %p137 = scmp.le.s32.totalorder 1, %s14
      %p138 = scmp.lt.s32.totalorder %s14, 3
      %p139 = pnand %p137, %p138
      %p140 = pneg %p139
      // Predicated region
      $region9: #{tpu_custom_call.1} parent=5 // pred_check
        _
      $region10: #{tpu_custom_call.1} parent=5 // pred_check_branch
        %142 = sbr.rel (%p139) target = $region12
      $region11: #{tpu_custom_call.1} parent=5 // pred_region
        %s143 = ssub.s32 %s14, 1
        // Predicated region
        $region13: #{tpu_custom_call.1} parent=11 // pred_check
          %p144 = pneg %p75
        $region14: #{tpu_custom_call.1} parent=11 // pred_check_branch
          %146 = sbr.rel (%p144) target = $region16
        $region15: #{tpu_custom_call.1} parent=11 // pred_region
          %s148 = ssub.s32 2048, 2048
          %149 = vsyncadd [#allocation3], %s148
          %s150 = sshll.u32 [#allocation2], 4
          %s151 = int_to_ptr.vmem [resolvable:$true] %s150
          %156 = dma.hbm_to_vmem [thread:$0]  %s1, 2048, %s151, [#allocation3], 512, 512, 32
        $region16: #{tpu_custom_call.1} parent=11 // pred_fallthru
          _
        // Predicated region
        $region17: #{tpu_custom_call.1} parent=11 // pred_check
          %p157 = pneg %p101
        $region18: #{tpu_custom_call.1} parent=11 // pred_check_branch
          %159 = sbr.rel (%p157) target = $region20
        $region19: #{tpu_custom_call.1} parent=11 // pred_region
          %s160 = smul.u32 2, %s23
          %s162 = ssub.s32 1024, 1024
          %163 = vsyncadd [#allocation6], %s162
          %s164 = smul.addr %s160, 4
          %s165 = smul.addr %s164, 128
          %s166 = scalar_lea.hbm %s2, %s165
          %s167 = sshll.u32 [#allocation5], 4
          %s168 = int_to_ptr.vmem [resolvable:$true] %s167
          %173 = dma.hbm_to_vmem [thread:$0]  %s166, 1024, %s168, [#allocation6], 512, 512, 32
        $region20: #{tpu_custom_call.1} parent=11 // pred_fallthru
          _
      $region12: #{tpu_custom_call.1} parent=5 // pred_fallthru
        _
      %p174 = scmp.lt.s32.totalorder %s14, 2
      // Predicated region
      $region21: #{tpu_custom_call.1} parent=5 // pred_check
        %p175 = pneg %p174
      $region22: #{tpu_custom_call.1} parent=5 // pred_check_branch
        %177 = sbr.rel (%p175) target = $region24
      $region23: #{tpu_custom_call.1} parent=5 // pred_region
        // Predicated region
        $region25: #{tpu_custom_call.1} parent=23 // pred_check
          %p178 = pneg %p48
        $region26: #{tpu_custom_call.1} parent=23 // pred_check_branch
          %180 = sbr.rel (%p178) target = $region28
        $region27: #{tpu_custom_call.1} parent=23 // pred_region
          %s181 = smul.u32 2, %s21
          %p182 = scmp.lt.s32.totalorder %s22, 1
          %s183 = scalar_select %p182, %s22, 1
          %p184 = scmp.lt.s32.totalorder %s181, 1
          %s185 = scalar_select %p184, %s181, 1
          %s186 = smul.addr %s183, 2
          %s187 = sadd.s32 %s185, %s186
          %s188 = smul.addr %s187, 8
          %s189 = scalar_lea.vmem %s0, %s188
          %s190 = smul.u32 2, %s21
        $region28: #{tpu_custom_call.1} parent=23 // pred_fallthru
          _
      $region24: #{tpu_custom_call.1} parent=5 // pred_fallthru
        _
      %p191 = scmp.le.s32.totalorder 1, %s14
      %p192 = scmp.lt.s32.totalorder %s14, 3
      %p193 = pnand %p191, %p192
      %p194 = pneg %p193
      // Predicated region
      $region29: #{tpu_custom_call.1} parent=5 // pred_check
        _
      $region30: #{tpu_custom_call.1} parent=5 // pred_check_branch
        %196 = sbr.rel (%p193) target = $region32
      $region31: #{tpu_custom_call.1} parent=5 // pred_region
        %s197 = ssub.s32 %s14, 1
        // Predicated region
        $region33: #{tpu_custom_call.1} parent=31 // pred_check
          %p198 = pneg %p75
        $region34: #{tpu_custom_call.1} parent=31 // pred_check_branch
          %200 = sbr.rel (%p198) target = $region36
        $region35: #{tpu_custom_call.1} parent=31 // pred_region
          %201 = dma.done [#allocation3], 2048
        $region36: #{tpu_custom_call.1} parent=31 // pred_fallthru
          _
        // Predicated region
        $region37: #{tpu_custom_call.1} parent=31 // pred_check
          %p202 = pneg %p101
        $region38: #{tpu_custom_call.1} parent=31 // pred_check_branch
          %204 = sbr.rel (%p202) target = $region40
        $region39: #{tpu_custom_call.1} parent=31 // pred_region
          %205 = dma.done [#allocation6], 1024
        $region40: #{tpu_custom_call.1} parent=31 // pred_fallthru
          _
        %s206 = smul.u32 2, %s23
        %p207 = scmp.lt.s32.totalorder %s24, 1
        %s208 = scalar_select %p207, %s24, 1
        %p209 = scmp.lt.s32.totalorder %s206, 1
        %s210 = scalar_select %p209, %s206, 1
        %s211 = smul.addr %s208, 2
        %s212 = sadd.s32 %s210, %s211
        %s213 = smul.addr %s212, 8
        %s214 = scalar_lea.vmem %s0, %s213
        %p215 = pneg %p54
        %p216 = pneg %p51
        %p217 = pneg %p75
        %p218 = pneg %p72
        %p219 = pneg %p101
        %p220 = pneg %p98
        %p221 = pneg %p129
        %p222 = pneg %p126
        %s223 = sand.u32 %s116, 1
        %s224 = scalar_lea.sflag [#allocation4], %s223
        %s225 = sand.u32 %s116, 1
        %s226 = smul.addr %s225, 64
        %s227 = scalar_lea.vmem [#allocation7], %s226
        %s228 = smul.u32 2, %s23
        %p229 = scmp.lt.s32.totalorder %s24, 1
        %s230 = scalar_select %p229, %s24, 1
        %p231 = scmp.lt.s32.totalorder %s228, 1
        %s232 = scalar_select %p231, %s228, 1
        %s233 = smul.addr %s230, 2
        %s234 = sadd.s32 %s232, %s233
        %s235 = smul.addr %s234, 8
        %s236 = scalar_lea.vmem %s0, %s235
        %s237 = smul.u32 2, %s23
        %s238 = smul.u32 2, %s23
        %s239 = smul.u32 2, %s23
        %v240 = vld [vmem:[%s236] sm:$0xff]
        %v241 = vld [vmem:[%s236 + $0x8] sm:$0xff]
        %v242 = vlaneseq
        %v243 = vand.u32 %v242, 127
        %244 = vset.pattern.permute.xlu0 0
        %245 = vperm.xlu0 %244, %v240
        %v246 = vpop.permute.xlu0 %245
        %247 = vset.pattern.permute.xlu0 0
        %248 = vperm.xlu0 %247, %v241
        %v249 = vpop.permute.xlu0 %248
        %vm250 = vcmp.eq.s32.totalorder %v246, %v243
        %vm251 = vcmp.eq.s32.totalorder %v249, %v243
        %v252 = vsel %vm250, 1, 0
        %v253 = vsel %vm251, 1, 0
        %v254 = vcvt.s32.f32 %v252
        %v255 = vcvt.s32.f32 %v253
        %v256 = vld [vmem:[#allocation2] sm:$0xff]
        %v257 = vld [vmem:[#allocation2 + $0x8] sm:$0xff]
        %v258 = vld [vmem:[#allocation2 + $0x10] sm:$0xff]
        %v259 = vld [vmem:[#allocation2 + $0x18] sm:$0xff]
        %v260 = vld [vmem:[#allocation2 + $0x20] sm:$0xff]
        %v261 = vld [vmem:[#allocation2 + $0x28] sm:$0xff]
        %v262 = vld [vmem:[#allocation2 + $0x30] sm:$0xff]
        %v263 = vld [vmem:[#allocation2 + $0x38] sm:$0xff]
        %v264 = vld [vmem:[#allocation2 + $0x40] sm:$0xff]
        %v265 = vld [vmem:[#allocation2 + $0x48] sm:$0xff]
        %v266 = vld [vmem:[#allocation2 + $0x50] sm:$0xff]
        %v267 = vld [vmem:[#allocation2 + $0x58] sm:$0xff]
        %v268 = vld [vmem:[#allocation2 + $0x60] sm:$0xff]
        %v269 = vld [vmem:[#allocation2 + $0x68] sm:$0xff]
        %v270 = vld [vmem:[#allocation2 + $0x70] sm:$0xff]
        %v271 = vld [vmem:[#allocation2 + $0x78] sm:$0xff]
        %v272 = vld [vmem:[#allocation5] sm:$0xff]
        %v273 = vld [vmem:[#allocation5 + $0x8] sm:$0xff]
        %v274 = vld [vmem:[#allocation5 + $0x10] sm:$0xff]
        %v275 = vld [vmem:[#allocation5 + $0x18] sm:$0xff]
        %v276 = vld [vmem:[#allocation5 + $0x20] sm:$0xff]
        %v277 = vld [vmem:[#allocation5 + $0x28] sm:$0xff]
        %v278 = vld [vmem:[#allocation5 + $0x30] sm:$0xff]
        %v279 = vld [vmem:[#allocation5 + $0x38] sm:$0xff]
        %vm280 = vcmask 261120
        %v282 = vsel %vm280, %v254, 0
        %v285 = vsel %vm280, %v255, 0
        %v287 = vand.u32 %v257, 4294901760
        %288 = vmatprep.subr.mxu0 %v287
        %v289 = vand.u32 %v256, 4294901760
        %290 = vmatpush1.msra.mxu0 %v289
        %v291 = vand.u32 %v261, 4294901760
        %292 = vmatprep.subr.mxu0 %v291
        %v293 = vand.u32 %v260, 4294901760
        %294 = vmatpush1.msra.mxu0 %v293
        %v295 = vand.u32 %v265, 4294901760
        %296 = vmatprep.subr.mxu0 %v295
        %v297 = vand.u32 %v264, 4294901760
        %298 = vmatpush1.msra.mxu0 %v297
        %v299 = vand.u32 %v269, 4294901760
        %300 = vmatprep.subr.mxu0 %v299
        %v301 = vand.u32 %v268, 4294901760
        %302 = vmatpush1.msra.mxu0 %v301
        %303 = vmatprep.subr.mxu0 0.0
        %304 = vmatpush1.msra.mxu0 0.0
        %305 = vmatprep.subr.mxu0 0.0
        %306 = vmatpush1.msra.mxu0 0.0
        %307 = vmatprep.subr.mxu0 0.0
        %308 = vmatpush1.msra.mxu0 0.0
        %309 = vmatprep.subr.mxu0 0.0
        %310 = vmatpush1.msra.mxu0 0.0
        %311 = vmatprep.subr.mxu0 0.0
        %312 = vmatpush1.msra.mxu0 0.0
        %313 = vmatprep.subr.mxu0 0.0
        %314 = vmatpush1.msra.mxu0 0.0
        %315 = vmatprep.subr.mxu0 0.0
        %316 = vmatpush1.msra.mxu0 0.0
        %317 = vmatprep.subr.mxu0 0.0
        %318 = vmatpush1.msra.mxu0 0.0
        %319 = vmatprep.subr.mxu0 0.0
        %320 = vmatpush1.msra.mxu0 0.0
        %321 = vmatprep.subr.mxu0 0.0
        %322 = vmatpush1.msra.mxu0 0.0
        %323 = vmatprep.subr.mxu0 0.0
        %324 = vmatpush1.msra.mxu0 0.0
        %325 = vmatprep.subr.mxu0 0.0
        %326 = vmatpush1.msra.mxu0 0.0
        %327 = vmatprep.subr.mxu0 0.0
        %328 = vmatpush1.msra.mxu0 0.0
        %329 = vmatprep.subr.mxu0 0.0
        %330 = vmatpush1.msra.mxu0 0.0
        %331 = vmatprep.subr.mxu0 0.0
        %332 = vmatpush1.msra.mxu0 0.0
        %333 = vmatprep.subr.mxu0 0.0
        %334 = vmatpush1.msra.mxu0 0.0
        %335 = vmatprep.subr.mxu0 0.0
        %336 = vmatpush1.msra.mxu0 0.0
        %337 = vmatprep.subr.mxu0 0.0
        %338 = vmatpush1.msra.mxu0 0.0
        %339 = vmatprep.subr.mxu0 0.0
        %340 = vmatpush1.msra.mxu0 0.0
        %341 = vmatprep.subr.mxu0 0.0
        %342 = vmatpush1.msra.mxu0 0.0
        %343 = vmatprep.subr.mxu0 0.0
        %344 = vmatpush1.msra.mxu0 0.0
        %345 = vmatprep.subr.mxu0 0.0
        %346 = vmatpush1.msra.mxu0 0.0
        %347 = vmatprep.subr.mxu0 0.0
        %348 = vmatpush1.msra.mxu0 0.0
        %349 = vmatprep.subr.mxu0 0.0
        %350 = vmatpush1.msra.mxu0 0.0
        %351 = vmatprep.subr.mxu0 0.0
        %352 = vmatpush1.msra.mxu0 0.0
        %353 = vmatprep.subr.mxu0 0.0
        %354 = vmatpush1.msra.mxu0 0.0
        %355 = vmatprep.subr.mxu0 0.0
        %356 = vmatpush1.msra.mxu0 0.0
        %357 = vmatprep.subr.mxu0 0.0
        %358 = vmatpush1.msra.mxu0 0.0
        %359 = vmatprep.mubr.f32.mxu0 0.0
        %v360 = vand.u32 %v282, 4294901760
        %v361 = vsub.f32 %v282, %v360
        %v362 = vand.u32 %v361, 4294901760
        %v363 = vsub.f32 %v361, %v362
        %v364 = vand.u32 %v363, 4294901760
        %365 = vmatmul.mubr.f32.gmra.mrb[0].mxu0 %v364
        %v366 = vpop.f32.mrb[0].mxu0
        %v367 = vadd.f32 %v272, %v366
        %v368 = vpop.f32.mrb[0].mxu0
        %v369 = vadd.f32 %v273, %v368
        %370 = vmatprep.mubr.f32.mxu0 0.0
        %v371 = vand.u32 %v285, 4294901760
        %v372 = vsub.f32 %v285, %v371
        %v373 = vand.u32 %v372, 4294901760
        %v374 = vsub.f32 %v372, %v373
        %v375 = vand.u32 %v374, 4294901760
        %376 = vmatmul.mubr.f32.gmra.mrb[0].mxu0 %v375
        %v377 = vpop.f32.mrb[0].mxu0
        %v378 = vadd.f32 %v276, %v377
        %v379 = vpop.f32.mrb[0].mxu0
        %v380 = vadd.f32 %v277, %v379
        %381 = vdwg.mxu0
        %v382 = vand.u32 %v257, 4294901760
        %v383 = vsub.f32 %v257, %v382
        %v384 = vand.u32 %v383, 4294901760
        %v385 = vsub.f32 %v383, %v384
        %v386 = vand.u32 %v385, 4294901760
        %387 = vmatprep.subr.mxu0 %v386
        %v388 = vand.u32 %v256, 4294901760
        %v389 = vsub.f32 %v256, %v388
        %v390 = vand.u32 %v389, 4294901760
        %v391 = vsub.f32 %v389, %v390
        %v392 = vand.u32 %v391, 4294901760
        %393 = vmatpush1.msra.mxu0 %v392
        %v394 = vand.u32 %v261, 4294901760
        %v395 = vsub.f32 %v261, %v394
        %v396 = vand.u32 %v395, 4294901760
        %v397 = vsub.f32 %v395, %v396
        %v398 = vand.u32 %v397, 4294901760
        %399 = vmatprep.subr.mxu0 %v398
        %v400 = vand.u32 %v260, 4294901760
        %v401 = vsub.f32 %v260, %v400
        %v402 = vand.u32 %v401, 4294901760
        %v403 = vsub.f32 %v401, %v402
        %v404 = vand.u32 %v403, 4294901760
        %405 = vmatpush1.msra.mxu0 %v404
        %v406 = vand.u32 %v265, 4294901760
        %v407 = vsub.f32 %v265, %v406
        %v408 = vand.u32 %v407, 4294901760
        %v409 = vsub.f32 %v407, %v408
        %v410 = vand.u32 %v409, 4294901760
        %411 = vmatprep.subr.mxu0 %v410
        %v412 = vand.u32 %v264, 4294901760
        %v413 = vsub.f32 %v264, %v412
        %v414 = vand.u32 %v413, 4294901760
        %v415 = vsub.f32 %v413, %v414
        %v416 = vand.u32 %v415, 4294901760
        %417 = vmatpush1.msra.mxu0 %v416
        %v418 = vand.u32 %v269, 4294901760
        %v419 = vsub.f32 %v269, %v418
        %v420 = vand.u32 %v419, 4294901760
        %v421 = vsub.f32 %v419, %v420
        %v422 = vand.u32 %v421, 4294901760
        %423 = vmatprep.subr.mxu0 %v422
        %v424 = vand.u32 %v268, 4294901760
        %v425 = vsub.f32 %v268, %v424
        %v426 = vand.u32 %v425, 4294901760
        %v427 = vsub.f32 %v425, %v426
        %v428 = vand.u32 %v427, 4294901760
        %429 = vmatpush1.msra.mxu0 %v428
        %430 = vmatprep.subr.mxu0 0.0
        %431 = vmatpush1.msra.mxu0 0.0
        %432 = vmatprep.subr.mxu0 0.0
        %433 = vmatpush1.msra.mxu0 0.0
        %434 = vmatprep.subr.mxu0 0.0
        %435 = vmatpush1.msra.mxu0 0.0
        %436 = vmatprep.subr.mxu0 0.0
        %437 = vmatpush1.msra.mxu0 0.0
        %438 = vmatprep.subr.mxu0 0.0
        %439 = vmatpush1.msra.mxu0 0.0
        %440 = vmatprep.subr.mxu0 0.0
        %441 = vmatpush1.msra.mxu0 0.0
        %442 = vmatprep.subr.mxu0 0.0
        %443 = vmatpush1.msra.mxu0 0.0
        %444 = vmatprep.subr.mxu0 0.0
        %445 = vmatpush1.msra.mxu0 0.0
        %446 = vmatprep.subr.mxu0 0.0
        %447 = vmatpush1.msra.mxu0 0.0
        %448 = vmatprep.subr.mxu0 0.0
        %449 = vmatpush1.msra.mxu0 0.0
        %450 = vmatprep.subr.mxu0 0.0
        %451 = vmatpush1.msra.mxu0 0.0
        %452 = vmatprep.subr.mxu0 0.0
        %453 = vmatpush1.msra.mxu0 0.0
        %454 = vmatprep.subr.mxu0 0.0
        %455 = vmatpush1.msra.mxu0 0.0
        %456 = vmatprep.subr.mxu0 0.0
        %457 = vmatpush1.msra.mxu0 0.0
        %458 = vmatprep.subr.mxu0 0.0
        %459 = vmatpush1.msra.mxu0 0.0
        %460 = vmatprep.subr.mxu0 0.0
        %461 = vmatpush1.msra.mxu0 0.0
        %462 = vmatprep.subr.mxu0 0.0
        %463 = vmatpush1.msra.mxu0 0.0
        %464 = vmatprep.subr.mxu0 0.0
        %465 = vmatpush1.msra.mxu0 0.0
        %466 = vmatprep.subr.mxu0 0.0
        %467 = vmatpush1.msra.mxu0 0.0
        %468 = vmatprep.subr.mxu0 0.0
        %469 = vmatpush1.msra.mxu0 0.0
        %470 = vmatprep.subr.mxu0 0.0
        %471 = vmatpush1.msra.mxu0 0.0
        %472 = vmatprep.subr.mxu0 0.0
        %473 = vmatpush1.msra.mxu0 0.0
        %474 = vmatprep.subr.mxu0 0.0
        %475 = vmatpush1.msra.mxu0 0.0
        %476 = vmatprep.subr.mxu0 0.0
        %477 = vmatpush1.msra.mxu0 0.0
        %478 = vmatprep.subr.mxu0 0.0
        %479 = vmatpush1.msra.mxu0 0.0
        %480 = vmatprep.subr.mxu0 0.0
        %481 = vmatpush1.msra.mxu0 0.0
        %482 = vmatprep.subr.mxu0 0.0
        %483 = vmatpush1.msra.mxu0 0.0
        %484 = vmatprep.subr.mxu0 0.0
        %485 = vmatpush1.msra.mxu0 0.0
        %486 = vmatprep.mubr.f32.mxu0 0.0
        %v487 = vand.u32 %v282, 4294901760
        %488 = vmatmul.mubr.f32.gmra.mrb[0].mxu0 %v487
        %v489 = vpop.f32.mrb[0].mxu0
        %v490 = vadd.f32 %v367, %v489
        %v491 = vpop.f32.mrb[0].mxu0
        %v492 = vadd.f32 %v369, %v491
        %493 = vmatprep.mubr.f32.mxu0 0.0
        %v494 = vand.u32 %v285, 4294901760
        %495 = vmatmul.mubr.f32.gmra.mrb[0].mxu0 %v494
        %v496 = vpop.f32.mrb[0].mxu0
        %v497 = vadd.f32 %v378, %v496
        %v498 = vpop.f32.mrb[0].mxu0
        %v499 = vadd.f32 %v380, %v498
        %500 = vdwg.mxu0
        %v501 = vand.u32 %v257, 4294901760
        %v502 = vsub.f32 %v257, %v501
        %503 = vmatprep.subr.mxu0 %v502
        %v504 = vand.u32 %v256, 4294901760
        %v505 = vsub.f32 %v256, %v504
        %506 = vmatpush1.msra.mxu0 %v505
        %v507 = vand.u32 %v261, 4294901760
        %v508 = vsub.f32 %v261, %v507
        %509 = vmatprep.subr.mxu0 %v508
        %v510 = vand.u32 %v260, 4294901760
        %v511 = vsub.f32 %v260, %v510
        %512 = vmatpush1.msra.mxu0 %v511
        %v513 = vand.u32 %v265, 4294901760
        %v514 = vsub.f32 %v265, %v513
        %515 = vmatprep.subr.mxu0 %v514
        %v516 = vand.u32 %v264, 4294901760
        %v517 = vsub.f32 %v264, %v516
        %518 = vmatpush1.msra.mxu0 %v517
        %v519 = vand.u32 %v269, 4294901760
        %v520 = vsub.f32 %v269, %v519
        %521 = vmatprep.subr.mxu0 %v520
        %v522 = vand.u32 %v268, 4294901760
        %v523 = vsub.f32 %v268, %v522
        %524 = vmatpush1.msra.mxu0 %v523
        %525 = vmatprep.subr.mxu0 0.0
        %526 = vmatpush1.msra.mxu0 0.0
        %527 = vmatprep.subr.mxu0 0.0
        %528 = vmatpush1.msra.mxu0 0.0
        %529 = vmatprep.subr.mxu0 0.0
        %530 = vmatpush1.msra.mxu0 0.0
        %531 = vmatprep.subr.mxu0 0.0
        %532 = vmatpush1.msra.mxu0 0.0
        %533 = vmatprep.subr.mxu0 0.0
        %534 = vmatpush1.msra.mxu0 0.0
        %535 = vmatprep.subr.mxu0 0.0
        %536 = vmatpush1.msra.mxu0 0.0
        %537 = vmatprep.subr.mxu0 0.0
        %538 = vmatpush1.msra.mxu0 0.0
        %539 = vmatprep.subr.mxu0 0.0
        %540 = vmatpush1.msra.mxu0 0.0
        %541 = vmatprep.subr.mxu0 0.0
        %542 = vmatpush1.msra.mxu0 0.0
        %543 = vmatprep.subr.mxu0 0.0
        %544 = vmatpush1.msra.mxu0 0.0
        %545 = vmatprep.subr.mxu0 0.0
        %546 = vmatpush1.msra.mxu0 0.0
        %547 = vmatprep.subr.mxu0 0.0
        %548 = vmatpush1.msra.mxu0 0.0
        %549 = vmatprep.subr.mxu0 0.0
        %550 = vmatpush1.msra.mxu0 0.0
        %551 = vmatprep.subr.mxu0 0.0
        %552 = vmatpush1.msra.mxu0 0.0
        %553 = vmatprep.subr.mxu0 0.0
        %554 = vmatpush1.msra.mxu0 0.0
        %555 = vmatprep.subr.mxu0 0.0
        %556 = vmatpush1.msra.mxu0 0.0
        %557 = vmatprep.subr.mxu0 0.0
        %558 = vmatpush1.msra.mxu0 0.0
        %559 = vmatprep.subr.mxu0 0.0
        %560 = vmatpush1.msra.mxu0 0.0
        %561 = vmatprep.subr.mxu0 0.0
        %562 = vmatpush1.msra.mxu0 0.0
        %563 = vmatprep.subr.mxu0 0.0
        %564 = vmatpush1.msra.mxu0 0.0
        %565 = vmatprep.subr.mxu0 0.0
        %566 = vmatpush1.msra.mxu0 0.0
        %567 = vmatprep.subr.mxu0 0.0
        %568 = vmatpush1.msra.mxu0 0.0
        %569 = vmatprep.subr.mxu0 0.0
        %570 = vmatpush1.msra.mxu0 0.0
        %571 = vmatprep.subr.mxu0 0.0
        %572 = vmatpush1.msra.mxu0 0.0
        %573 = vmatprep.subr.mxu0 0.0
        %574 = vmatpush1.msra.mxu0 0.0
        %575 = vmatprep.subr.mxu0 0.0
        %576 = vmatpush1.msra.mxu0 0.0
        %577 = vmatprep.subr.mxu0 0.0
        %578 = vmatpush1.msra.mxu0 0.0
        %579 = vmatprep.subr.mxu0 0.0
        %580 = vmatpush1.msra.mxu0 0.0
        %581 = vmatprep.mubr.f32.mxu0 0.0
        %v582 = vand.u32 %v282, 4294901760
        %v583 = vsub.f32 %v282, %v582
        %584 = vmatmul.mubr.f32.gmra.mrb[0].mxu0 %v583
        %v585 = vpop.f32.mrb[0].mxu0
        %v586 = vadd.f32 %v490, %v585
        %v587 = vpop.f32.mrb[0].mxu0
        %v588 = vadd.f32 %v492, %v587
        %589 = vmatprep.mubr.f32.mxu0 0.0
        %v590 = vand.u32 %v285, 4294901760
        %v591 = vsub.f32 %v285, %v590
        %592 = vmatmul.mubr.f32.gmra.mrb[0].mxu0 %v591
        %v593 = vpop.f32.mrb[0].mxu0
        %v594 = vadd.f32 %v497, %v593
        %v595 = vpop.f32.mrb[0].mxu0
        %v596 = vadd.f32 %v499, %v595
        %597 = vdwg.mxu0
        %v598 = vand.u32 %v257, 4294901760
        %599 = vmatprep.subr.mxu0 %v598
        %v600 = vand.u32 %v256, 4294901760
        %601 = vmatpush1.msra.mxu0 %v600
        %v602 = vand.u32 %v261, 4294901760
        %603 = vmatprep.subr.mxu0 %v602
        %v604 = vand.u32 %v260, 4294901760
        %605 = vmatpush1.msra.mxu0 %v604
        %v606 = vand.u32 %v265, 4294901760
        %607 = vmatprep.subr.mxu0 %v606
        %v608 = vand.u32 %v264, 4294901760
        %609 = vmatpush1.msra.mxu0 %v608
        %v610 = vand.u32 %v269, 4294901760
        %611 = vmatprep.subr.mxu0 %v610
        %v612 = vand.u32 %v268, 4294901760
        %613 = vmatpush1.msra.mxu0 %v612
        %614 = vmatprep.subr.mxu0 0.0
        %615 = vmatpush1.msra.mxu0 0.0
        %616 = vmatprep.subr.mxu0 0.0
        %617 = vmatpush1.msra.mxu0 0.0
        %618 = vmatprep.subr.mxu0 0.0
        %619 = vmatpush1.msra.mxu0 0.0
        %620 = vmatprep.subr.mxu0 0.0
        %621 = vmatpush1.msra.mxu0 0.0
        %622 = vmatprep.subr.mxu0 0.0
        %623 = vmatpush1.msra.mxu0 0.0
        %624 = vmatprep.subr.mxu0 0.0
        %625 = vmatpush1.msra.mxu0 0.0
        %626 = vmatprep.subr.mxu0 0.0
        %627 = vmatpush1.msra.mxu0 0.0
        %628 = vmatprep.subr.mxu0 0.0
        %629 = vmatpush1.msra.mxu0 0.0
        %630 = vmatprep.subr.mxu0 0.0
        %631 = vmatpush1.msra.mxu0 0.0
        %632 = vmatprep.subr.mxu0 0.0
        %633 = vmatpush1.msra.mxu0 0.0
        %634 = vmatprep.subr.mxu0 0.0
        %635 = vmatpush1.msra.mxu0 0.0
        %636 = vmatprep.subr.mxu0 0.0
        %637 = vmatpush1.msra.mxu0 0.0
        %638 = vmatprep.subr.mxu0 0.0
        %639 = vmatpush1.msra.mxu0 0.0
        %640 = vmatprep.subr.mxu0 0.0
        %641 = vmatpush1.msra.mxu0 0.0
        %642 = vmatprep.subr.mxu0 0.0
        %643 = vmatpush1.msra.mxu0 0.0
        %644 = vmatprep.subr.mxu0 0.0
        %645 = vmatpush1.msra.mxu0 0.0
        %646 = vmatprep.subr.mxu0 0.0
        %647 = vmatpush1.msra.mxu0 0.0
        %648 = vmatprep.subr.mxu0 0.0
        %649 = vmatpush1.msra.mxu0 0.0
        %650 = vmatprep.subr.mxu0 0.0
        %651 = vmatpush1.msra.mxu0 0.0
        %652 = vmatprep.subr.mxu0 0.0
        %653 = vmatpush1.msra.mxu0 0.0
        %654 = vmatprep.subr.mxu0 0.0
        %655 = vmatpush1.msra.mxu0 0.0
        %656 = vmatprep.subr.mxu0 0.0
        %657 = vmatpush1.msra.mxu0 0.0
        %658 = vmatprep.subr.mxu0 0.0
        %659 = vmatpush1.msra.mxu0 0.0
        %660 = vmatprep.subr.mxu0 0.0
        %661 = vmatpush1.msra.mxu0 0.0
        %662 = vmatprep.subr.mxu0 0.0
        %663 = vmatpush1.msra.mxu0 0.0
        %664 = vmatprep.subr.mxu0 0.0
        %665 = vmatpush1.msra.mxu0 0.0
        %666 = vmatprep.subr.mxu0 0.0
        %667 = vmatpush1.msra.mxu0 0.0
        %668 = vmatprep.subr.mxu0 0.0
        %669 = vmatpush1.msra.mxu0 0.0
        %670 = vmatprep.mubr.f32.mxu0 0.0
        %v671 = vand.u32 %v282, 4294901760
        %v672 = vsub.f32 %v282, %v671
        %v673 = vand.u32 %v672, 4294901760
        %674 = vmatmul.mubr.f32.gmra.mrb[0].mxu0 %v673
        %v675 = vpop.f32.mrb[0].mxu0
        %v676 = vadd.f32 %v586, %v675
        %v677 = vpop.f32.mrb[0].mxu0
        %v678 = vadd.f32 %v588, %v677
        %679 = vmatprep.mubr.f32.mxu0 0.0
        %v680 = vand.u32 %v285, 4294901760
        %v681 = vsub.f32 %v285, %v680
        %v682 = vand.u32 %v681, 4294901760
        %683 = vmatmul.mubr.f32.gmra.mrb[0].mxu0 %v682
        %v684 = vpop.f32.mrb[0].mxu0
        %v685 = vadd.f32 %v594, %v684
        %v686 = vpop.f32.mrb[0].mxu0
        %v687 = vadd.f32 %v596, %v686
        %688 = vdwg.mxu0
        %v689 = vand.u32 %v257, 4294901760
        %v690 = vsub.f32 %v257, %v689
        %v691 = vand.u32 %v690, 4294901760
        %692 = vmatprep.subr.mxu0 %v691
        %v693 = vand.u32 %v256, 4294901760
        %v694 = vsub.f32 %v256, %v693
        %v695 = vand.u32 %v694, 4294901760
        %696 = vmatpush1.msra.mxu0 %v695
        %v697 = vand.u32 %v261, 4294901760
        %v698 = vsub.f32 %v261, %v697
        %v699 = vand.u32 %v698, 4294901760
        %700 = vmatprep.subr.mxu0 %v699
        %v701 = vand.u32 %v260, 4294901760
        %v702 = vsub.f32 %v260, %v701
        %v703 = vand.u32 %v702, 4294901760
        %704 = vmatpush1.msra.mxu0 %v703
        %v705 = vand.u32 %v265, 4294901760
        %v706 = vsub.f32 %v265, %v705
        %v707 = vand.u32 %v706, 4294901760
        %708 = vmatprep.subr.mxu0 %v707
        %v709 = vand.u32 %v264, 4294901760
        %v710 = vsub.f32 %v264, %v709
        %v711 = vand.u32 %v710, 4294901760
        %712 = vmatpush1.msra.mxu0 %v711
        %v713 = vand.u32 %v269, 4294901760
        %v714 = vsub.f32 %v269, %v713
        %v715 = vand.u32 %v714, 4294901760
        %716 = vmatprep.subr.mxu0 %v715
        %v717 = vand.u32 %v268, 4294901760
        %v718 = vsub.f32 %v268, %v717
        %v719 = vand.u32 %v718, 4294901760
        %720 = vmatpush1.msra.mxu0 %v719
        %721 = vmatprep.subr.mxu0 0.0
        %722 = vmatpush1.msra.mxu0 0.0
        %723 = vmatprep.subr.mxu0 0.0
        %724 = vmatpush1.msra.mxu0 0.0
        %725 = vmatprep.subr.mxu0 0.0
        %726 = vmatpush1.msra.mxu0 0.0
        %727 = vmatprep.subr.mxu0 0.0
        %728 = vmatpush1.msra.mxu0 0.0
        %729 = vmatprep.subr.mxu0 0.0
        %730 = vmatpush1.msra.mxu0 0.0
        %731 = vmatprep.subr.mxu0 0.0
        %732 = vmatpush1.msra.mxu0 0.0
        %733 = vmatprep.subr.mxu0 0.0
        %734 = vmatpush1.msra.mxu0 0.0
        %735 = vmatprep.subr.mxu0 0.0
        %736 = vmatpush1.msra.mxu0 0.0
        %737 = vmatprep.subr.mxu0 0.0
        %738 = vmatpush1.msra.mxu0 0.0
        %739 = vmatprep.subr.mxu0 0.0
        %740 = vmatpush1.msra.mxu0 0.0
        %741 = vmatprep.subr.mxu0 0.0
        %742 = vmatpush1.msra.mxu0 0.0
        %743 = vmatprep.subr.mxu0 0.0
        %744 = vmatpush1.msra.mxu0 0.0
        %745 = vmatprep.subr.mxu0 0.0
        %746 = vmatpush1.msra.mxu0 0.0
        %747 = vmatprep.subr.mxu0 0.0
        %748 = vmatpush1.msra.mxu0 0.0
        %749 = vmatprep.subr.mxu0 0.0
        %750 = vmatpush1.msra.mxu0 0.0
        %751 = vmatprep.subr.mxu0 0.0
        %752 = vmatpush1.msra.mxu0 0.0
        %753 = vmatprep.subr.mxu0 0.0
        %754 = vmatpush1.msra.mxu0 0.0
        %755 = vmatprep.subr.mxu0 0.0
        %756 = vmatpush1.msra.mxu0 0.0
        %757 = vmatprep.subr.mxu0 0.0
        %758 = vmatpush1.msra.mxu0 0.0
        %759 = vmatprep.subr.mxu0 0.0
        %760 = vmatpush1.msra.mxu0 0.0
        %761 = vmatprep.subr.mxu0 0.0
        %762 = vmatpush1.msra.mxu0 0.0
        %763 = vmatprep.subr.mxu0 0.0
        %764 = vmatpush1.msra.mxu0 0.0
        %765 = vmatprep.subr.mxu0 0.0
        %766 = vmatpush1.msra.mxu0 0.0
        %767 = vmatprep.subr.mxu0 0.0
        %768 = vmatpush1.msra.mxu0 0.0
        %769 = vmatprep.subr.mxu0 0.0
        %770 = vmatpush1.msra.mxu0 0.0
        %771 = vmatprep.subr.mxu0 0.0
        %772 = vmatpush1.msra.mxu0 0.0
        %773 = vmatprep.subr.mxu0 0.0
        %774 = vmatpush1.msra.mxu0 0.0
        %775 = vmatprep.subr.mxu0 0.0
        %776 = vmatpush1.msra.mxu0 0.0
        %777 = vmatprep.mubr.f32.mxu0 0.0
        %v778 = vand.u32 %v282, 4294901760
        %779 = vmatmul.mubr.f32.gmra.mrb[0].mxu0 %v778
        %v780 = vpop.f32.mrb[0].mxu0
        %v781 = vadd.f32 %v676, %v780
        %v782 = vpop.f32.mrb[0].mxu0
        %v783 = vadd.f32 %v678, %v782
        %784 = vmatprep.mubr.f32.mxu0 0.0
        %v785 = vand.u32 %v285, 4294901760
        %786 = vmatmul.mubr.f32.gmra.mrb[0].mxu0 %v785
        %v787 = vpop.f32.mrb[0].mxu0
        %v788 = vadd.f32 %v685, %v787
        %v789 = vpop.f32.mrb[0].mxu0
        %v790 = vadd.f32 %v687, %v789
        %791 = vdwg.mxu0
        %v792 = vand.u32 %v257, 4294901760
        %793 = vmatprep.subr.mxu0 %v792
        %v794 = vand.u32 %v256, 4294901760
        %795 = vmatpush1.msra.mxu0 %v794
        %v796 = vand.u32 %v261, 4294901760
        %797 = vmatprep.subr.mxu0 %v796
        %v798 = vand.u32 %v260, 4294901760
        %799 = vmatpush1.msra.mxu0 %v798
        %v800 = vand.u32 %v265, 4294901760
        %801 = vmatprep.subr.mxu0 %v800
        %v802 = vand.u32 %v264, 4294901760
        %803 = vmatpush1.msra.mxu0 %v802
        %v804 = vand.u32 %v269, 4294901760
        %805 = vmatprep.subr.mxu0 %v804
        %v806 = vand.u32 %v268, 4294901760
        %807 = vmatpush1.msra.mxu0 %v806
        %808 = vmatprep.subr.mxu0 0.0
        %809 = vmatpush1.msra.mxu0 0.0
        %810 = vmatprep.subr.mxu0 0.0
        %811 = vmatpush1.msra.mxu0 0.0
        %812 = vmatprep.subr.mxu0 0.0
        %813 = vmatpush1.msra.mxu0 0.0
        %814 = vmatprep.subr.mxu0 0.0
        %815 = vmatpush1.msra.mxu0 0.0
        %816 = vmatprep.subr.mxu0 0.0
        %817 = vmatpush1.msra.mxu0 0.0
        %818 = vmatprep.subr.mxu0 0.0
        %819 = vmatpush1.msra.mxu0 0.0
        %820 = vmatprep.subr.mxu0 0.0
        %821 = vmatpush1.msra.mxu0 0.0
        %822 = vmatprep.subr.mxu0 0.0
        %823 = vmatpush1.msra.mxu0 0.0
        %824 = vmatprep.subr.mxu0 0.0
        %825 = vmatpush1.msra.mxu0 0.0
        %826 = vmatprep.subr.mxu0 0.0
        %827 = vmatpush1.msra.mxu0 0.0
        %828 = vmatprep.subr.mxu0 0.0
        %829 = vmatpush1.msra.mxu0 0.0
        %830 = vmatprep.subr.mxu0 0.0
        %831 = vmatpush1.msra.mxu0 0.0
        %832 = vmatprep.subr.mxu0 0.0
        %833 = vmatpush1.msra.mxu0 0.0
        %834 = vmatprep.subr.mxu0 0.0
        %835 = vmatpush1.msra.mxu0 0.0
        %836 = vmatprep.subr.mxu0 0.0
        %837 = vmatpush1.msra.mxu0 0.0
        %838 = vmatprep.subr.mxu0 0.0
        %839 = vmatpush1.msra.mxu0 0.0
        %840 = vmatprep.subr.mxu0 0.0
        %841 = vmatpush1.msra.mxu0 0.0
        %842 = vmatprep.subr.mxu0 0.0
        %843 = vmatpush1.msra.mxu0 0.0
        %844 = vmatprep.subr.mxu0 0.0
        %845 = vmatpush1.msra.mxu0 0.0
        %846 = vmatprep.subr.mxu0 0.0
        %847 = vmatpush1.msra.mxu0 0.0
        %848 = vmatprep.subr.mxu0 0.0
        %849 = vmatpush1.msra.mxu0 0.0
        %850 = vmatprep.subr.mxu0 0.0
        %851 = vmatpush1.msra.mxu0 0.0
        %852 = vmatprep.subr.mxu0 0.0
        %853 = vmatpush1.msra.mxu0 0.0
        %854 = vmatprep.subr.mxu0 0.0
        %855 = vmatpush1.msra.mxu0 0.0
        %856 = vmatprep.subr.mxu0 0.0
        %857 = vmatpush1.msra.mxu0 0.0
        %858 = vmatprep.subr.mxu0 0.0
        %859 = vmatpush1.msra.mxu0 0.0
        %860 = vmatprep.subr.mxu0 0.0
        %861 = vmatpush1.msra.mxu0 0.0
        %862 = vmatprep.subr.mxu0 0.0
        %863 = vmatpush1.msra.mxu0 0.0
        %864 = vmatprep.mubr.f32.mxu0 0.0
        %v865 = vand.u32 %v282, 4294901760
        %866 = vmatmul.mubr.f32.gmra.mrb[0].mxu0 %v865
        %v867 = vpop.f32.mrb[0].mxu0
        %v868 = vadd.f32 %v781, %v867
        %v869 = vpop.f32.mrb[0].mxu0
        %v870 = vadd.f32 %v783, %v869
        %871 = vmatprep.mubr.f32.mxu0 0.0
        %v872 = vand.u32 %v285, 4294901760
        %873 = vmatmul.mubr.f32.gmra.mrb[0].mxu0 %v872
        %v874 = vpop.f32.mrb[0].mxu0
        %v875 = vadd.f32 %v788, %v874
        %v876 = vpop.f32.mrb[0].mxu0
        %v877 = vadd.f32 %v790, %v876
        %878 = vdwg.mxu0
        %v879 = vand.u32 %v259, 4294901760
        %880 = vmatprep.subr.mxu0 %v879
        %v881 = vand.u32 %v258, 4294901760
        %882 = vmatpush1.msra.mxu0 %v881
        %v883 = vand.u32 %v263, 4294901760
        %884 = vmatprep.subr.mxu0 %v883
        %v885 = vand.u32 %v262, 4294901760
        %886 = vmatpush1.msra.mxu0 %v885
        %v887 = vand.u32 %v267, 4294901760
        %888 = vmatprep.subr.mxu0 %v887
        %v889 = vand.u32 %v266, 4294901760
        %890 = vmatpush1.msra.mxu0 %v889
        %v891 = vand.u32 %v271, 4294901760
        %892 = vmatprep.subr.mxu0 %v891
        %v893 = vand.u32 %v270, 4294901760
        %894 = vmatpush1.msra.mxu0 %v893
        %895 = vmatprep.subr.mxu0 0.0
        %896 = vmatpush1.msra.mxu0 0.0
        %897 = vmatprep.subr.mxu0 0.0
        %898 = vmatpush1.msra.mxu0 0.0
        %899 = vmatprep.subr.mxu0 0.0
        %900 = vmatpush1.msra.mxu0 0.0
        %901 = vmatprep.subr.mxu0 0.0
        %902 = vmatpush1.msra.mxu0 0.0
        %903 = vmatprep.subr.mxu0 0.0
        %904 = vmatpush1.msra.mxu0 0.0
        %905 = vmatprep.subr.mxu0 0.0
        %906 = vmatpush1.msra.mxu0 0.0
        %907 = vmatprep.subr.mxu0 0.0
        %908 = vmatpush1.msra.mxu0 0.0
        %909 = vmatprep.subr.mxu0 0.0
        %910 = vmatpush1.msra.mxu0 0.0
        %911 = vmatprep.subr.mxu0 0.0
        %912 = vmatpush1.msra.mxu0 0.0
        %913 = vmatprep.subr.mxu0 0.0
        %914 = vmatpush1.msra.mxu0 0.0
        %915 = vmatprep.subr.mxu0 0.0
        %916 = vmatpush1.msra.mxu0 0.0
        %917 = vmatprep.subr.mxu0 0.0
        %918 = vmatpush1.msra.mxu0 0.0
        %919 = vmatprep.subr.mxu0 0.0
        %920 = vmatpush1.msra.mxu0 0.0
        %921 = vmatprep.subr.mxu0 0.0
        %922 = vmatpush1.msra.mxu0 0.0
        %923 = vmatprep.subr.mxu0 0.0
        %924 = vmatpush1.msra.mxu0 0.0
        %925 = vmatprep.subr.mxu0 0.0
        %926 = vmatpush1.msra.mxu0 0.0
        %927 = vmatprep.subr.mxu0 0.0
        %928 = vmatpush1.msra.mxu0 0.0
        %929 = vmatprep.subr.mxu0 0.0
        %930 = vmatpush1.msra.mxu0 0.0
        %931 = vmatprep.subr.mxu0 0.0
        %932 = vmatpush1.msra.mxu0 0.0
        %933 = vmatprep.subr.mxu0 0.0
        %934 = vmatpush1.msra.mxu0 0.0
        %935 = vmatprep.subr.mxu0 0.0
        %936 = vmatpush1.msra.mxu0 0.0
        %937 = vmatprep.subr.mxu0 0.0
        %938 = vmatpush1.msra.mxu0 0.0
        %939 = vmatprep.subr.mxu0 0.0
        %940 = vmatpush1.msra.mxu0 0.0
        %941 = vmatprep.subr.mxu0 0.0
        %942 = vmatpush1.msra.mxu0 0.0
        %943 = vmatprep.subr.mxu0 0.0
        %944 = vmatpush1.msra.mxu0 0.0
        %945 = vmatprep.subr.mxu0 0.0
        %946 = vmatpush1.msra.mxu0 0.0
        %947 = vmatprep.subr.mxu0 0.0
        %948 = vmatpush1.msra.mxu0 0.0
        %949 = vmatprep.subr.mxu0 0.0
        %950 = vmatpush1.msra.mxu0 0.0
        %951 = vmatprep.mubr.f32.mxu0 0.0
        %v952 = vand.u32 %v282, 4294901760
        %v953 = vsub.f32 %v282, %v952
        %v954 = vand.u32 %v953, 4294901760
        %v955 = vsub.f32 %v953, %v954
        %v956 = vand.u32 %v955, 4294901760
        %957 = vmatmul.mubr.f32.gmra.mrb[0].mxu0 %v956
        %v958 = vpop.f32.mrb[0].mxu0
        %v959 = vadd.f32 %v274, %v958
        %v960 = vpop.f32.mrb[0].mxu0
        %v961 = vadd.f32 %v275, %v960
        %962 = vmatprep.mubr.f32.mxu0 0.0
        %v963 = vand.u32 %v285, 4294901760
        %v964 = vsub.f32 %v285, %v963
        %v965 = vand.u32 %v964, 4294901760
        %v966 = vsub.f32 %v964, %v965
        %v967 = vand.u32 %v966, 4294901760
        %968 = vmatmul.mubr.f32.gmra.mrb[0].mxu0 %v967
        %v969 = vpop.f32.mrb[0].mxu0
        %v970 = vadd.f32 %v278, %v969
        %v971 = vpop.f32.mrb[0].mxu0
        %v972 = vadd.f32 %v279, %v971
        %973 = vdwg.mxu0
        %v974 = vand.u32 %v259, 4294901760
        %v975 = vsub.f32 %v259, %v974
        %v976 = vand.u32 %v975, 4294901760
        %v977 = vsub.f32 %v975, %v976
        %v978 = vand.u32 %v977, 4294901760
        %979 = vmatprep.subr.mxu0 %v978
        %v980 = vand.u32 %v258, 4294901760
        %v981 = vsub.f32 %v258, %v980
        %v982 = vand.u32 %v981, 4294901760
        %v983 = vsub.f32 %v981, %v982
        %v984 = vand.u32 %v983, 4294901760
        %985 = vmatpush1.msra.mxu0 %v984
        %v986 = vand.u32 %v263, 4294901760
        %v987 = vsub.f32 %v263, %v986
        %v988 = vand.u32 %v987, 4294901760
        %v989 = vsub.f32 %v987, %v988
        %v990 = vand.u32 %v989, 4294901760
        %991 = vmatprep.subr.mxu0 %v990
        %v992 = vand.u32 %v262, 4294901760
        %v993 = vsub.f32 %v262, %v992
        %v994 = vand.u32 %v993, 4294901760
        %v995 = vsub.f32 %v993, %v994
        %v996 = vand.u32 %v995, 4294901760
        %997 = vmatpush1.msra.mxu0 %v996
        %v998 = vand.u32 %v267, 4294901760
        %v999 = vsub.f32 %v267, %v998
        %v1000 = vand.u32 %v999, 4294901760
        %v1001 = vsub.f32 %v999, %v1000
        %v1002 = vand.u32 %v1001, 4294901760
        %1003 = vmatprep.subr.mxu0 %v1002
        %v1004 = vand.u32 %v266, 4294901760
        %v1005 = vsub.f32 %v266, %v1004
        %v1006 = vand.u32 %v1005, 4294901760
        %v1007 = vsub.f32 %v1005, %v1006
        %v1008 = vand.u32 %v1007, 4294901760
        %1009 = vmatpush1.msra.mxu0 %v1008
        %v1010 = vand.u32 %v271, 4294901760
        %v1011 = vsub.f32 %v271, %v1010
        %v1012 = vand.u32 %v1011, 4294901760
        %v1013 = vsub.f32 %v1011, %v1012
        %v1014 = vand.u32 %v1013, 4294901760
        %1015 = vmatprep.subr.mxu0 %v1014
        %v1016 = vand.u32 %v270, 4294901760
        %v1017 = vsub.f32 %v270, %v1016
        %v1018 = vand.u32 %v1017, 4294901760
        %v1019 = vsub.f32 %v1017, %v1018
        %v1020 = vand.u32 %v1019, 4294901760
        %1021 = vmatpush1.msra.mxu0 %v1020
        %1022 = vmatprep.subr.mxu0 0.0
        %1023 = vmatpush1.msra.mxu0 0.0
        %1024 = vmatprep.subr.mxu0 0.0
        %1025 = vmatpush1.msra.mxu0 0.0
        %1026 = vmatprep.subr.mxu0 0.0
        %1027 = vmatpush1.msra.mxu0 0.0
        %1028 = vmatprep.subr.mxu0 0.0
        %1029 = vmatpush1.msra.mxu0 0.0
        %1030 = vmatprep.subr.mxu0 0.0
        %1031 = vmatpush1.msra.mxu0 0.0
        %1032 = vmatprep.subr.mxu0 0.0
        %1033 = vmatpush1.msra.mxu0 0.0
        %1034 = vmatprep.subr.mxu0 0.0
        %1035 = vmatpush1.msra.mxu0 0.0
        %1036 = vmatprep.subr.mxu0 0.0
        %1037 = vmatpush1.msra.mxu0 0.0
        %1038 = vmatprep.subr.mxu0 0.0
        %1039 = vmatpush1.msra.mxu0 0.0
        %1040 = vmatprep.subr.mxu0 0.0
        %1041 = vmatpush1.msra.mxu0 0.0
        %1042 = vmatprep.subr.mxu0 0.0
        %1043 = vmatpush1.msra.mxu0 0.0
        %1044 = vmatprep.subr.mxu0 0.0
        %1045 = vmatpush1.msra.mxu0 0.0
        %1046 = vmatprep.subr.mxu0 0.0
        %1047 = vmatpush1.msra.mxu0 0.0
        %1048 = vmatprep.subr.mxu0 0.0
        %1049 = vmatpush1.msra.mxu0 0.0
        %1050 = vmatprep.subr.mxu0 0.0
        %1051 = vmatpush1.msra.mxu0 0.0
        %1052 = vmatprep.subr.mxu0 0.0
        %1053 = vmatpush1.msra.mxu0 0.0
        %1054 = vmatprep.subr.mxu0 0.0
        %1055 = vmatpush1.msra.mxu0 0.0
        %1056 = vmatprep.subr.mxu0 0.0
        %1057 = vmatpush1.msra.mxu0 0.0
        %1058 = vmatprep.subr.mxu0 0.0
        %1059 = vmatpush1.msra.mxu0 0.0
        %1060 = vmatprep.subr.mxu0 0.0
        %1061 = vmatpush1.msra.mxu0 0.0
        %1062 = vmatprep.subr.mxu0 0.0
        %1063 = vmatpush1.msra.mxu0 0.0
        %1064 = vmatprep.subr.mxu0 0.0
        %1065 = vmatpush1.msra.mxu0 0.0
        %1066 = vmatprep.subr.mxu0 0.0
        %1067 = vmatpush1.msra.mxu0 0.0
        %1068 = vmatprep.subr.mxu0 0.0
        %1069 = vmatpush1.msra.mxu0 0.0
        %1070 = vmatprep.subr.mxu0 0.0
        %1071 = vmatpush1.msra.mxu0 0.0
        %1072 = vmatprep.subr.mxu0 0.0
        %1073 = vmatpush1.msra.mxu0 0.0
        %1074 = vmatprep.subr.mxu0 0.0
        %1075 = vmatpush1.msra.mxu0 0.0
        %1076 = vmatprep.subr.mxu0 0.0
        %1077 = vmatpush1.msra.mxu0 0.0
        %1078 = vmatprep.mubr.f32.mxu0 0.0
        %v1079 = vand.u32 %v282, 4294901760
        %1080 = vmatmul.mubr.f32.gmra.mrb[0].mxu0 %v1079
        %v1081 = vpop.f32.mrb[0].mxu0
        %v1082 = vadd.f32 %v959, %v1081
        %v1083 = vpop.f32.mrb[0].mxu0
        %v1084 = vadd.f32 %v961, %v1083
        %1085 = vmatprep.mubr.f32.mxu0 0.0
        %v1086 = vand.u32 %v285, 4294901760
        %1087 = vmatmul.mubr.f32.gmra.mrb[0].mxu0 %v1086
        %v1088 = vpop.f32.mrb[0].mxu0
        %v1089 = vadd.f32 %v970, %v1088
        %v1090 = vpop.f32.mrb[0].mxu0
        %v1091 = vadd.f32 %v972, %v1090
        %1092 = vdwg.mxu0
        %v1093 = vand.u32 %v259, 4294901760
        %v1094 = vsub.f32 %v259, %v1093
        %1095 = vmatprep.subr.mxu0 %v1094
        %v1096 = vand.u32 %v258, 4294901760
        %v1097 = vsub.f32 %v258, %v1096
        %1098 = vmatpush1.msra.mxu0 %v1097
        %v1099 = vand.u32 %v263, 4294901760
        %v1100 = vsub.f32 %v263, %v1099
        %1101 = vmatprep.subr.mxu0 %v1100
        %v1102 = vand.u32 %v262, 4294901760
        %v1103 = vsub.f32 %v262, %v1102
        %1104 = vmatpush1.msra.mxu0 %v1103
        %v1105 = vand.u32 %v267, 4294901760
        %v1106 = vsub.f32 %v267, %v1105
        %1107 = vmatprep.subr.mxu0 %v1106
        %v1108 = vand.u32 %v266, 4294901760
        %v1109 = vsub.f32 %v266, %v1108
        %1110 = vmatpush1.msra.mxu0 %v1109
        %v1111 = vand.u32 %v271, 4294901760
        %v1112 = vsub.f32 %v271, %v1111
        %1113 = vmatprep.subr.mxu0 %v1112
        %v1114 = vand.u32 %v270, 4294901760
        %v1115 = vsub.f32 %v270, %v1114
        %1116 = vmatpush1.msra.mxu0 %v1115
        %1117 = vmatprep.subr.mxu0 0.0
        %1118 = vmatpush1.msra.mxu0 0.0
        %1119 = vmatprep.subr.mxu0 0.0
        %1120 = vmatpush1.msra.mxu0 0.0
        %1121 = vmatprep.subr.mxu0 0.0
        %1122 = vmatpush1.msra.mxu0 0.0
        %1123 = vmatprep.subr.mxu0 0.0
        %1124 = vmatpush1.msra.mxu0 0.0
        %1125 = vmatprep.subr.mxu0 0.0
        %1126 = vmatpush1.msra.mxu0 0.0
        %1127 = vmatprep.subr.mxu0 0.0
        %1128 = vmatpush1.msra.mxu0 0.0
        %1129 = vmatprep.subr.mxu0 0.0
        %1130 = vmatpush1.msra.mxu0 0.0
        %1131 = vmatprep.subr.mxu0 0.0
        %1132 = vmatpush1.msra.mxu0 0.0
        %1133 = vmatprep.subr.mxu0 0.0
        %1134 = vmatpush1.msra.mxu0 0.0
        %1135 = vmatprep.subr.mxu0 0.0
        %1136 = vmatpush1.msra.mxu0 0.0
        %1137 = vmatprep.subr.mxu0 0.0
        %1138 = vmatpush1.msra.mxu0 0.0
        %1139 = vmatprep.subr.mxu0 0.0
        %1140 = vmatpush1.msra.mxu0 0.0
        %1141 = vmatprep.subr.mxu0 0.0
        %1142 = vmatpush1.msra.mxu0 0.0
        %1143 = vmatprep.subr.mxu0 0.0
        %1144 = vmatpush1.msra.mxu0 0.0
        %1145 = vmatprep.subr.mxu0 0.0
        %1146 = vmatpush1.msra.mxu0 0.0
        %1147 = vmatprep.subr.mxu0 0.0
        %1148 = vmatpush1.msra.mxu0 0.0
        %1149 = vmatprep.subr.mxu0 0.0
        %1150 = vmatpush1.msra.mxu0 0.0
        %1151 = vmatprep.subr.mxu0 0.0
        %1152 = vmatpush1.msra.mxu0 0.0
        %1153 = vmatprep.subr.mxu0 0.0
        %1154 = vmatpush1.msra.mxu0 0.0
        %1155 = vmatprep.subr.mxu0 0.0
        %1156 = vmatpush1.msra.mxu0 0.0
        %1157 = vmatprep.subr.mxu0 0.0
        %1158 = vmatpush1.msra.mxu0 0.0
        %1159 = vmatprep.subr.mxu0 0.0
        %1160 = vmatpush1.msra.mxu0 0.0
        %1161 = vmatprep.subr.mxu0 0.0
        %1162 = vmatpush1.msra.mxu0 0.0
        %1163 = vmatprep.subr.mxu0 0.0
        %1164 = vmatpush1.msra.mxu0 0.0
        %1165 = vmatprep.subr.mxu0 0.0
        %1166 = vmatpush1.msra.mxu0 0.0
        %1167 = vmatprep.subr.mxu0 0.0
        %1168 = vmatpush1.msra.mxu0 0.0
        %1169 = vmatprep.subr.mxu0 0.0
        %1170 = vmatpush1.msra.mxu0 0.0
        %1171 = vmatprep.subr.mxu0 0.0
        %1172 = vmatpush1.msra.mxu0 0.0
        %1173 = vmatprep.mubr.f32.mxu0 0.0
        %v1174 = vand.u32 %v282, 4294901760
        %v1175 = vsub.f32 %v282, %v1174
        %1176 = vmatmul.mubr.f32.gmra.mrb[0].mxu0 %v1175
        %v1177 = vpop.f32.mrb[0].mxu0
        %v1178 = vadd.f32 %v1082, %v1177
        %v1179 = vpop.f32.mrb[0].mxu0
        %v1180 = vadd.f32 %v1084, %v1179
        %1181 = vmatprep.mubr.f32.mxu0 0.0
        %v1182 = vand.u32 %v285, 4294901760
        %v1183 = vsub.f32 %v285, %v1182
        %1184 = vmatmul.mubr.f32.gmra.mrb[0].mxu0 %v1183
        %v1185 = vpop.f32.mrb[0].mxu0
        %v1186 = vadd.f32 %v1089, %v1185
        %v1187 = vpop.f32.mrb[0].mxu0
        %v1188 = vadd.f32 %v1091, %v1187
        %1189 = vdwg.mxu0
        %v1190 = vand.u32 %v259, 4294901760
        %1191 = vmatprep.subr.mxu0 %v1190
        %v1192 = vand.u32 %v258, 4294901760
        %1193 = vmatpush1.msra.mxu0 %v1192
        %v1194 = vand.u32 %v263, 4294901760
        %1195 = vmatprep.subr.mxu0 %v1194
        %v1196 = vand.u32 %v262, 4294901760
        %1197 = vmatpush1.msra.mxu0 %v1196
        %v1198 = vand.u32 %v267, 4294901760
        %1199 = vmatprep.subr.mxu0 %v1198
        %v1200 = vand.u32 %v266, 4294901760
        %1201 = vmatpush1.msra.mxu0 %v1200
        %v1202 = vand.u32 %v271, 4294901760
        %1203 = vmatprep.subr.mxu0 %v1202
        %v1204 = vand.u32 %v270, 4294901760
        %1205 = vmatpush1.msra.mxu0 %v1204
        %1206 = vmatprep.subr.mxu0 0.0
        %1207 = vmatpush1.msra.mxu0 0.0
        %1208 = vmatprep.subr.mxu0 0.0
        %1209 = vmatpush1.msra.mxu0 0.0
        %1210 = vmatprep.subr.mxu0 0.0
        %1211 = vmatpush1.msra.mxu0 0.0
        %1212 = vmatprep.subr.mxu0 0.0
        %1213 = vmatpush1.msra.mxu0 0.0
        %1214 = vmatprep.subr.mxu0 0.0
        %1215 = vmatpush1.msra.mxu0 0.0
        %1216 = vmatprep.subr.mxu0 0.0
        %1217 = vmatpush1.msra.mxu0 0.0
        %1218 = vmatprep.subr.mxu0 0.0
        %1219 = vmatpush1.msra.mxu0 0.0
        %1220 = vmatprep.subr.mxu0 0.0
        %1221 = vmatpush1.msra.mxu0 0.0
        %1222 = vmatprep.subr.mxu0 0.0
        %1223 = vmatpush1.msra.mxu0 0.0
        %1224 = vmatprep.subr.mxu0 0.0
        %1225 = vmatpush1.msra.mxu0 0.0
        %1226 = vmatprep.subr.mxu0 0.0
        %1227 = vmatpush1.msra.mxu0 0.0
        %1228 = vmatprep.subr.mxu0 0.0
        %1229 = vmatpush1.msra.mxu0 0.0
        %1230 = vmatprep.subr.mxu0 0.0
        %1231 = vmatpush1.msra.mxu0 0.0
        %1232 = vmatprep.subr.mxu0 0.0
        %1233 = vmatpush1.msra.mxu0 0.0
        %1234 = vmatprep.subr.mxu0 0.0
        %1235 = vmatpush1.msra.mxu0 0.0
        %1236 = vmatprep.subr.mxu0 0.0
        %1237 = vmatpush1.msra.mxu0 0.0
        %1238 = vmatprep.subr.mxu0 0.0
        %1239 = vmatpush1.msra.mxu0 0.0
        %1240 = vmatprep.subr.mxu0 0.0
        %1241 = vmatpush1.msra.mxu0 0.0
        %1242 = vmatprep.subr.mxu0 0.0
        %1243 = vmatpush1.msra.mxu0 0.0
        %1244 = vmatprep.subr.mxu0 0.0
        %1245 = vmatpush1.msra.mxu0 0.0
        %1246 = vmatprep.subr.mxu0 0.0
        %1247 = vmatpush1.msra.mxu0 0.0
        %1248 = vmatprep.subr.mxu0 0.0
        %1249 = vmatpush1.msra.mxu0 0.0
        %1250 = vmatprep.subr.mxu0 0.0
        %1251 = vmatpush1.msra.mxu0 0.0
        %1252 = vmatprep.subr.mxu0 0.0
        %1253 = vmatpush1.msra.mxu0 0.0
        %1254 = vmatprep.subr.mxu0 0.0
        %1255 = vmatpush1.msra.mxu0 0.0
        %1256 = vmatprep.subr.mxu0 0.0
        %1257 = vmatpush1.msra.mxu0 0.0
        %1258 = vmatprep.subr.mxu0 0.0
        %1259 = vmatpush1.msra.mxu0 0.0
        %1260 = vmatprep.subr.mxu0 0.0
        %1261 = vmatpush1.msra.mxu0 0.0
        %1262 = vmatprep.mubr.f32.mxu0 0.0
        %v1263 = vand.u32 %v282, 4294901760
        %v1264 = vsub.f32 %v282, %v1263
        %v1265 = vand.u32 %v1264, 4294901760
        %1266 = vmatmul.mubr.f32.gmra.mrb[0].mxu0 %v1265
        %v1267 = vpop.f32.mrb[0].mxu0
        %v1268 = vadd.f32 %v1178, %v1267
        %v1269 = vpop.f32.mrb[0].mxu0
        %v1270 = vadd.f32 %v1180, %v1269
        %1271 = vmatprep.mubr.f32.mxu0 0.0
        %v1272 = vand.u32 %v285, 4294901760
        %v1273 = vsub.f32 %v285, %v1272
        %v1274 = vand.u32 %v1273, 4294901760
        %1275 = vmatmul.mubr.f32.gmra.mrb[0].mxu0 %v1274
        %v1276 = vpop.f32.mrb[0].mxu0
        %v1277 = vadd.f32 %v1186, %v1276
        %v1278 = vpop.f32.mrb[0].mxu0
        %v1279 = vadd.f32 %v1188, %v1278
        %1280 = vdwg.mxu0
        %v1281 = vand.u32 %v259, 4294901760
        %v1282 = vsub.f32 %v259, %v1281
        %v1283 = vand.u32 %v1282, 4294901760
        %1284 = vmatprep.subr.mxu0 %v1283
        %v1285 = vand.u32 %v258, 4294901760
        %v1286 = vsub.f32 %v258, %v1285
        %v1287 = vand.u32 %v1286, 4294901760
        %1288 = vmatpush1.msra.mxu0 %v1287
        %v1289 = vand.u32 %v263, 4294901760
        %v1290 = vsub.f32 %v263, %v1289
        %v1291 = vand.u32 %v1290, 4294901760
        %1292 = vmatprep.subr.mxu0 %v1291
        %v1293 = vand.u32 %v262, 4294901760
        %v1294 = vsub.f32 %v262, %v1293
        %v1295 = vand.u32 %v1294, 4294901760
        %1296 = vmatpush1.msra.mxu0 %v1295
        %v1297 = vand.u32 %v267, 4294901760
        %v1298 = vsub.f32 %v267, %v1297
        %v1299 = vand.u32 %v1298, 4294901760
        %1300 = vmatprep.subr.mxu0 %v1299
        %v1301 = vand.u32 %v266, 4294901760
        %v1302 = vsub.f32 %v266, %v1301
        %v1303 = vand.u32 %v1302, 4294901760
        %1304 = vmatpush1.msra.mxu0 %v1303
        %v1305 = vand.u32 %v271, 4294901760
        %v1306 = vsub.f32 %v271, %v1305
        %v1307 = vand.u32 %v1306, 4294901760
        %1308 = vmatprep.subr.mxu0 %v1307
        %v1309 = vand.u32 %v270, 4294901760
        %v1310 = vsub.f32 %v270, %v1309
        %v1311 = vand.u32 %v1310, 4294901760
        %1312 = vmatpush1.msra.mxu0 %v1311
        %1313 = vmatprep.subr.mxu0 0.0
        %1314 = vmatpush1.msra.mxu0 0.0
        %1315 = vmatprep.subr.mxu0 0.0
        %1316 = vmatpush1.msra.mxu0 0.0
        %1317 = vmatprep.subr.mxu0 0.0
        %1318 = vmatpush1.msra.mxu0 0.0
        %1319 = vmatprep.subr.mxu0 0.0
        %1320 = vmatpush1.msra.mxu0 0.0
        %1321 = vmatprep.subr.mxu0 0.0
        %1322 = vmatpush1.msra.mxu0 0.0
        %1323 = vmatprep.subr.mxu0 0.0
        %1324 = vmatpush1.msra.mxu0 0.0
        %1325 = vmatprep.subr.mxu0 0.0
        %1326 = vmatpush1.msra.mxu0 0.0
        %1327 = vmatprep.subr.mxu0 0.0
        %1328 = vmatpush1.msra.mxu0 0.0
        %1329 = vmatprep.subr.mxu0 0.0
        %1330 = vmatpush1.msra.mxu0 0.0
        %1331 = vmatprep.subr.mxu0 0.0
        %1332 = vmatpush1.msra.mxu0 0.0
        %1333 = vmatprep.subr.mxu0 0.0
        %1334 = vmatpush1.msra.mxu0 0.0
        %1335 = vmatprep.subr.mxu0 0.0
        %1336 = vmatpush1.msra.mxu0 0.0
        %1337 = vmatprep.subr.mxu0 0.0
        %1338 = vmatpush1.msra.mxu0 0.0
        %1339 = vmatprep.subr.mxu0 0.0
        %1340 = vmatpush1.msra.mxu0 0.0
        %1341 = vmatprep.subr.mxu0 0.0
        %1342 = vmatpush1.msra.mxu0 0.0
        %1343 = vmatprep.subr.mxu0 0.0
        %1344 = vmatpush1.msra.mxu0 0.0
        %1345 = vmatprep.subr.mxu0 0.0
        %1346 = vmatpush1.msra.mxu0 0.0
        %1347 = vmatprep.subr.mxu0 0.0
        %1348 = vmatpush1.msra.mxu0 0.0
        %1349 = vmatprep.subr.mxu0 0.0
        %1350 = vmatpush1.msra.mxu0 0.0
        %1351 = vmatprep.subr.mxu0 0.0
        %1352 = vmatpush1.msra.mxu0 0.0
        %1353 = vmatprep.subr.mxu0 0.0
        %1354 = vmatpush1.msra.mxu0 0.0
        %1355 = vmatprep.subr.mxu0 0.0
        %1356 = vmatpush1.msra.mxu0 0.0
        %1357 = vmatprep.subr.mxu0 0.0
        %1358 = vmatpush1.msra.mxu0 0.0
        %1359 = vmatprep.subr.mxu0 0.0
        %1360 = vmatpush1.msra.mxu0 0.0
        %1361 = vmatprep.subr.mxu0 0.0
        %1362 = vmatpush1.msra.mxu0 0.0
        %1363 = vmatprep.subr.mxu0 0.0
        %1364 = vmatpush1.msra.mxu0 0.0
        %1365 = vmatprep.subr.mxu0 0.0
        %1366 = vmatpush1.msra.mxu0 0.0
        %1367 = vmatprep.subr.mxu0 0.0
        %1368 = vmatpush1.msra.mxu0 0.0
        %1369 = vmatprep.mubr.f32.mxu0 0.0
        %v1370 = vand.u32 %v282, 4294901760
        %1371 = vmatmul.mubr.f32.gmra.mrb[0].mxu0 %v1370
        %v1372 = vpop.f32.mrb[0].mxu0
        %v1373 = vadd.f32 %v1268, %v1372
        %v1374 = vpop.f32.mrb[0].mxu0
        %v1375 = vadd.f32 %v1270, %v1374
        %1376 = vmatprep.mubr.f32.mxu0 0.0
        %v1377 = vand.u32 %v285, 4294901760
        %1378 = vmatmul.mubr.f32.gmra.mrb[0].mxu0 %v1377
        %v1379 = vpop.f32.mrb[0].mxu0
        %v1380 = vadd.f32 %v1277, %v1379
        %v1381 = vpop.f32.mrb[0].mxu0
        %v1382 = vadd.f32 %v1279, %v1381
        %1383 = vdwg.mxu0
        %v1384 = vand.u32 %v259, 4294901760
        %1385 = vmatprep.subr.mxu0 %v1384
        %v1386 = vand.u32 %v258, 4294901760
        %1387 = vmatpush1.msra.mxu0 %v1386
        %v1388 = vand.u32 %v263, 4294901760
        %1389 = vmatprep.subr.mxu0 %v1388
        %v1390 = vand.u32 %v262, 4294901760
        %1391 = vmatpush1.msra.mxu0 %v1390
        %v1392 = vand.u32 %v267, 4294901760
        %1393 = vmatprep.subr.mxu0 %v1392
        %v1394 = vand.u32 %v266, 4294901760
        %1395 = vmatpush1.msra.mxu0 %v1394
        %v1396 = vand.u32 %v271, 4294901760
        %1397 = vmatprep.subr.mxu0 %v1396
        %v1398 = vand.u32 %v270, 4294901760
        %1399 = vmatpush1.msra.mxu0 %v1398
        %1400 = vmatprep.subr.mxu0 0.0
        %1401 = vmatpush1.msra.mxu0 0.0
        %1402 = vmatprep.subr.mxu0 0.0
        %1403 = vmatpush1.msra.mxu0 0.0
        %1404 = vmatprep.subr.mxu0 0.0
        %1405 = vmatpush1.msra.mxu0 0.0
        %1406 = vmatprep.subr.mxu0 0.0
        %1407 = vmatpush1.msra.mxu0 0.0
        %1408 = vmatprep.subr.mxu0 0.0
        %1409 = vmatpush1.msra.mxu0 0.0
        %1410 = vmatprep.subr.mxu0 0.0
        %1411 = vmatpush1.msra.mxu0 0.0
        %1412 = vmatprep.subr.mxu0 0.0
        %1413 = vmatpush1.msra.mxu0 0.0
        %1414 = vmatprep.subr.mxu0 0.0
        %1415 = vmatpush1.msra.mxu0 0.0
        %1416 = vmatprep.subr.mxu0 0.0
        %1417 = vmatpush1.msra.mxu0 0.0
        %1418 = vmatprep.subr.mxu0 0.0
        %1419 = vmatpush1.msra.mxu0 0.0
        %1420 = vmatprep.subr.mxu0 0.0
        %1421 = vmatpush1.msra.mxu0 0.0
        %1422 = vmatprep.subr.mxu0 0.0
        %1423 = vmatpush1.msra.mxu0 0.0
        %1424 = vmatprep.subr.mxu0 0.0
        %1425 = vmatpush1.msra.mxu0 0.0
        %1426 = vmatprep.subr.mxu0 0.0
        %1427 = vmatpush1.msra.mxu0 0.0
        %1428 = vmatprep.subr.mxu0 0.0
        %1429 = vmatpush1.msra.mxu0 0.0
        %1430 = vmatprep.subr.mxu0 0.0
        %1431 = vmatpush1.msra.mxu0 0.0
        %1432 = vmatprep.subr.mxu0 0.0
        %1433 = vmatpush1.msra.mxu0 0.0
        %1434 = vmatprep.subr.mxu0 0.0
        %1435 = vmatpush1.msra.mxu0 0.0
        %1436 = vmatprep.subr.mxu0 0.0
        %1437 = vmatpush1.msra.mxu0 0.0
        %1438 = vmatprep.subr.mxu0 0.0
        %1439 = vmatpush1.msra.mxu0 0.0
        %1440 = vmatprep.subr.mxu0 0.0
        %1441 = vmatpush1.msra.mxu0 0.0
        %1442 = vmatprep.subr.mxu0 0.0
        %1443 = vmatpush1.msra.mxu0 0.0
        %1444 = vmatprep.subr.mxu0 0.0
        %1445 = vmatpush1.msra.mxu0 0.0
        %1446 = vmatprep.subr.mxu0 0.0
        %1447 = vmatpush1.msra.mxu0 0.0
        %1448 = vmatprep.subr.mxu0 0.0
        %1449 = vmatpush1.msra.mxu0 0.0
        %1450 = vmatprep.subr.mxu0 0.0
        %1451 = vmatpush1.msra.mxu0 0.0
        %1452 = vmatprep.subr.mxu0 0.0
        %1453 = vmatpush1.msra.mxu0 0.0
        %1454 = vmatprep.subr.mxu0 0.0
        %1455 = vmatpush1.msra.mxu0 0.0
        %1456 = vmatprep.mubr.f32.mxu0 0.0
        %v1457 = vand.u32 %v282, 4294901760
        %1458 = vmatmul.mubr.f32.gmra.mrb[0].mxu0 %v1457
        %v1459 = vpop.f32.mrb[0].mxu0
        %v1460 = vadd.f32 %v1373, %v1459
        %v1461 = vpop.f32.mrb[0].mxu0
        %v1462 = vadd.f32 %v1375, %v1461
        %1463 = vmatprep.mubr.f32.mxu0 0.0
        %v1464 = vand.u32 %v285, 4294901760
        %1465 = vmatmul.mubr.f32.gmra.mrb[0].mxu0 %v1464
        %v1466 = vpop.f32.mrb[0].mxu0
        %v1467 = vadd.f32 %v1380, %v1466
        %v1468 = vpop.f32.mrb[0].mxu0
        %v1469 = vadd.f32 %v1382, %v1468
        %1470 = vdwg.mxu0
        %1471 = vst [vmem:[%s227] sm:$0xff] %v868
        %1472 = vst [vmem:[%s227 + $0x8] sm:$0xff] %v870
        %1473 = vst [vmem:[%s227 + $0x10] sm:$0xff] %v1460
        %1474 = vst [vmem:[%s227 + $0x18] sm:$0xff] %v1462
        %1475 = vst [vmem:[%s227 + $0x20] sm:$0xff] %v875
        %1476 = vst [vmem:[%s227 + $0x28] sm:$0xff] %v877
        %1477 = vst [vmem:[%s227 + $0x30] sm:$0xff] %v1467
        %1478 = vst [vmem:[%s227 + $0x38] sm:$0xff] %v1469
        %s1479 = sand.u32 %s116, 1
        %s1480 = scalar_lea.sflag [#allocation4], %s1479
        %s1481 = sand.u32 %s116, 1
        %s1482 = smul.addr %s1481, 64
        %s1483 = scalar_lea.vmem [#allocation7], %s1482
        // Predicated region
        $region41: #{tpu_custom_call.1} parent=31 // pred_check
          %p1484 = pneg %p126
        $region42: #{tpu_custom_call.1} parent=31 // pred_check_branch
          %1486 = sbr.rel (%p1484) target = $region44
        $region43: #{tpu_custom_call.1} parent=31 // pred_region
          %s1487 = smul.u32 2, %s23
          %s1489 = ssub.s32 1024, 1024
          %1490 = vsyncadd %s1480, %s1489
          %s1491 = smul.addr %s1487, 4
          %s1492 = smul.addr %s24, 8
          %s1493 = sadd.s32 %s1491, %s1492
          %s1494 = smul.addr %s1493, 128
          %s1495 = scalar_lea.hbm %s3, %s1494
          %s1496 = sshll.u32 %s1483, 4
          %s1497 = int_to_ptr.vmem [resolvable:$true] %s1496
          %1502 = dma.vmem_to_hbm [thread:$0]  %s1497, 1024, %s1495, %s1480, 512, 512, 32
        $region44: #{tpu_custom_call.1} parent=31 // pred_fallthru
          _
      $region32: #{tpu_custom_call.1} parent=5 // pred_fallthru
        _
      %p1503 = scmp.le.s32.totalorder 2, %s14
      // Predicated region
      $region45: #{tpu_custom_call.1} parent=5 // pred_check
        %p1504 = pneg %p1503
      $region46: #{tpu_custom_call.1} parent=5 // pred_check_branch
        %1506 = sbr.rel (%p1504) target = $region48
      $region47: #{tpu_custom_call.1} parent=5 // pred_region
        %s1507 = ssub.s32 %s14, 2
        // Predicated region
        $region49: #{tpu_custom_call.1} parent=47 // pred_check
          %p1508 = pneg %p132
        $region50: #{tpu_custom_call.1} parent=47 // pred_check_branch
          %1510 = sbr.rel (%p1508) target = $region52
        $region51: #{tpu_custom_call.1} parent=47 // pred_region
          %s1511 = sand.u32 %s117, 1
          %s1512 = scalar_lea.sflag [#allocation4], %s1511
          %s1513 = sand.u32 %s117, 1
          %s1514 = smul.addr %s1513, 64
          %s1515 = scalar_lea.vmem [#allocation7], %s1514
          %1516 = dma.done %s1512, 1024
        $region52: #{tpu_custom_call.1} parent=47 // pred_fallthru
          _
      $region48: #{tpu_custom_call.1} parent=5 // pred_fallthru
        _
    $region6: #{tpu_custom_call.1} parent=1 // loop_footer
      %s18 = sadd.s32 1, %s14
    $region7: #{tpu_custom_call.1} parent=1 // loop_footer_branch
      %13 = sbr.rel target = $region3
    $region8: #{tpu_custom_call.1} parent=1 // loop_exit
      _
    %1517 = vsyncpa [#allocation3], 1
    %s1518 = scalar_lea.sflag [#allocation3], 1
    %1519 = vsyncpa %s1518, 1
    %1520 = vsyncpa [#allocation6], 1
    %1521 = vsyncpa [#allocation4], 1
    %s1522 = scalar_lea.sflag [#allocation4], 1
    %1523 = vsyncpa %s1522, 1

</llo_original>
